<compile_context>
chip_gen: v7x
topology: tpu7x:2x2x1
jax: 0.10.0
libtpu: 0.0.40
codegen_flags: <defaults>
</compile_context>

<pallas_src>
import math

import jax
import jax.numpy as jnp
from jax.experimental import pallas as pl
from jax.experimental.pallas import tpu as pltpu


# ----------------------------------------------------------------------------
# Pallas kernel: per-block (ub users) complex matrix chain, right-to-left.
#   refs: p1,p2,p3: (ub, 2, M, M)   p4/out: (ub, 2, M, N)
# ----------------------------------------------------------------------------
def _unfold_kernel(p1_ref, p2_ref, p3_ref, p4_ref, out_ref):
    def cmm(ar, ai, br, bi):
        rr = jnp.einsum('umk,ukn->umn', ar, br,
                        preferred_element_type=jnp.float32)
        ii = jnp.einsum('umk,ukn->umn', ai, bi,
                        preferred_element_type=jnp.float32)
        ri = jnp.einsum('umk,ukn->umn', ar, bi,
                        preferred_element_type=jnp.float32)
        ir = jnp.einsum('umk,ukn->umn', ai, br,
                        preferred_element_type=jnp.float32)
        return rr - ii, ri + ir

    # Right-to-left association: every matmul has RHS width N (< 2M).
    tr, ti = cmm(p3_ref[:, 0], p3_ref[:, 1], p4_ref[:, 0], p4_ref[:, 1])
    tr, ti = cmm(p2_ref[:, 0], p2_ref[:, 1], tr, ti)
    tr, ti = cmm(p1_ref[:, 0], p1_ref[:, 1], tr, ti)

    out_ref[:, 0, :, :] = tr.astype(out_ref.dtype)
    out_ref[:, 1, :, :] = ti.astype(out_ref.dtype)


# ----------------------------------------------------------------------------
# VMEM-budgeted user-block selection.
# ----------------------------------------------------------------------------
def _choose_user_block(U, M, N):
    """Pick ub (divisor of U) so the double-buffered per-step footprint stays
    well under the scoped-VMEM limit on every generation (v7x: 64 MiB VMEM)."""
    in_bytes = (3 * 2 * M * M + 2 * M * N) * 4      # P1..P3 + P4, f32, per user
    out_bytes = 2 * M * N * 4                       # output, per user
    tmp_bytes = 6 * 2 * M * N * 4                   # live complex temps (generous)
    per_user = 2 * (in_bytes + out_bytes) + tmp_bytes   # 2x = double buffering
    budget = 24 << 20                               # conservative per-step budget
    cap = max(1, budget // per_user)
    if cap >= U:
        return U                                    # whole problem in one step
    # Prefer a grid extent >= 4 (prefetch overlap + both TCs loaded).
    best = 1
    for ub in range(1, cap + 1):
        if U % ub == 0 and U // ub >= 4:
            best = ub
    if best == 1:
        for ub in range(cap, 0, -1):                # fallback: largest divisor
            if U % ub == 0:
                best = ub
                break
    return best


def unfolding_matrix_forward(p1, p2, p3, p4):
    """p1,p2,p3: (U, 2, M, M) f32; p4: (U, 2, M, N) f32 -> (U, 2, M, N) f32."""
    U, _, M, _ = p1.shape
    N = p4.shape[-1]

    ub = _choose_user_block(U, M, N)
    grid = (U // ub,)

    mm_spec = pl.BlockSpec((ub, 2, M, M), lambda g: (g, 0, 0, 0))
    mn_spec = pl.BlockSpec((ub, 2, M, N), lambda g: (g, 0, 0, 0))

    # 3 complex matmul steps = 12 real (M,M)@(M,N) matmuls + 6 adds per user.
    flops = U * (3 * 4 * 2 * M * M * N + 3 * 2 * M * N)
    bytes_accessed = (3 * U * 2 * M * M + 2 * U * 2 * M * N) * 4

    out = pl.pallas_call(
        _unfold_kernel,
        out_shape=jax.ShapeDtypeStruct((U, 2, M, N), jnp.float32),
        grid_spec=pl.GridSpec(
            grid=grid,
            in_specs=[mm_spec, mm_spec, mm_spec, mn_spec],
            out_specs=mn_spec,
        ),
        compiler_params=pltpu.CompilerParams(
            dimension_semantics=("parallel",),
            vmem_limit_bytes=48 << 20,
        ),
        cost_estimate=pl.CostEstimate(
            flops=flops, transcendentals=0, bytes_accessed=bytes_accessed),
    )(p1, p2, p3, p4)

    return out


# ----------------------------------------------------------------------------
# Deterministic parameter setup (matches nn.init.xavier_uniform_ semantics)
# ----------------------------------------------------------------------------
def _xavier_uniform(key, shape, gain):
    # PyTorch fan computation for a tensor of rank >= 2:
    #   fan_in  = shape[1] * prod(shape[2:]);  fan_out = shape[0] * prod(shape[2:])
    receptive = int(math.prod(shape[2:])) if len(shape) > 2 else 1
    fan_in = shape[1] * receptive
    fan_out = shape[0] * receptive
    bound = gain * math.sqrt(6.0 / (fan_in + fan_out))
    return jax.random.uniform(key, shape, jnp.float32, -bound, bound)


def make_params(key, M, N, num_users, Xgain, Ygain, Zgain, Ogain):
    k1, k2, k3, k4 = jax.random.split(key, 4)
    p1 = jnp.stack([_xavier_uniform(jax.random.fold_in(k1, i), (2, M, M), Xgain)
                    for i in range(num_users)])
    p2 = jnp.stack([_xavier_uniform(jax.random.fold_in(k2, i), (2, M, M), Ygain)
                    for i in range(num_users)])
    p3 = jnp.stack([_xavier_uniform(jax.random.fold_in(k3, i), (2, M, M), Zgain)
                    for i in range(num_users)])
    p4 = jnp.stack([_xavier_uniform(jax.random.fold_in(k4, i), (2, M, N), Ogain)
                    for i in range(num_users)])
    return p1, p2, p3, p4


def _reference(p1, p2, p3, p4):
    def cmm(a, b):
        ar, ai = a[:, 0], a[:, 1]
        br, bi = b[:, 0], b[:, 1]
        zr = jnp.einsum('umk,ukn->umn', ar, br) - jnp.einsum('umk,ukn->umn', ai, bi)
        zi = jnp.einsum('umk,ukn->umn', ar, bi) + jnp.einsum('umk,ukn->umn', ai, br)
        return jnp.stack([zr, zi], axis=1)
    return cmm(cmm(cmm(p1, p2), p3), p4)


if __name__ == "__main__":
    M, N, num_users = 32, 16, 2
    Xgain, Ygain, Zgain, Ogain = 1.0, 0.5, 0.75, 1.25

    key = jax.random.PRNGKey(0)
    p1, p2, p3, p4 = make_params(key, M, N, num_users, Xgain, Ygain, Zgain, Ogain)

    out = unfolding_matrix_forward(p1, p2, p3, p4)
    out = jax.block_until_ready(out)

    ref = _reference(p1, p2, p3, p4)
    assert out.shape == (num_users, 2, M, N)
    assert jnp.allclose(out, ref, atol=1e-4, rtol=1e-4)

    print("KERNEL_OK")
</pallas_src>

<mosaic_0001>
module attributes {stable_mosaic.version = 11 : i64} {
  func.func @_unfold_kernel(%arg0: i32, %arg1: memref<2x2x32x32xf32, #tpu.memory_space<vmem>>, %arg2: memref<2x2x32x32xf32, #tpu.memory_space<vmem>>, %arg3: memref<2x2x32x32xf32, #tpu.memory_space<vmem>>, %arg4: memref<2x2x32x16xf32, #tpu.memory_space<vmem>>, %arg5: memref<2x2x32x16xf32, #tpu.memory_space<vmem>>) attributes {dimension_semantics = [#tpu.dimension_semantics<parallel>], iteration_bounds = array<i64: 1>, scalar_prefetch = 0 : i64, scratch_operands = 0 : i64, tpu.core_type = #tpu.core_type<tc>, window_params = [{transform_indices = @transform_0, window_bounds = array<i64: 2, 2, 32, 32>}, {transform_indices = @transform_1, window_bounds = array<i64: 2, 2, 32, 32>}, {transform_indices = @transform_2, window_bounds = array<i64: 2, 2, 32, 32>}, {transform_indices = @transform_3, window_bounds = array<i64: 2, 2, 32, 16>}, {transform_indices = @transform_4, window_bounds = array<i64: 2, 2, 32, 16>}]} {
    %c0 = arith.constant 0 : index
    %c0_0 = arith.constant 0 : index
    %c0_1 = arith.constant 0 : index
    %c0_2 = arith.constant 0 : index
    %0 = vector.load %arg3[%c0, %c0_0, %c0_1, %c0_2] : memref<2x2x32x32xf32, #tpu.memory_space<vmem>>, vector<2x1x32x32xf32>
    %1 = vector.shape_cast %0 : vector<2x1x32x32xf32> to vector<2x32x32xf32>
    %c0_3 = arith.constant 0 : index
    %c1 = arith.constant 1 : index
    %c0_4 = arith.constant 0 : index
    %c0_5 = arith.constant 0 : index
    %2 = vector.load %arg3[%c0_3, %c1, %c0_4, %c0_5] : memref<2x2x32x32xf32, #tpu.memory_space<vmem>>, vector<2x1x32x32xf32>
    %3 = vector.shape_cast %2 : vector<2x1x32x32xf32> to vector<2x32x32xf32>
    %c0_6 = arith.constant 0 : index
    %c0_7 = arith.constant 0 : index
    %c0_8 = arith.constant 0 : index
    %c0_9 = arith.constant 0 : index
    %4 = vector.load %arg4[%c0_6, %c0_7, %c0_8, %c0_9] : memref<2x2x32x16xf32, #tpu.memory_space<vmem>>, vector<2x1x32x16xf32>
    %5 = vector.shape_cast %4 : vector<2x1x32x16xf32> to vector<2x32x16xf32>
    %c0_10 = arith.constant 0 : index
    %c1_11 = arith.constant 1 : index
    %c0_12 = arith.constant 0 : index
    %c0_13 = arith.constant 0 : index
    %6 = vector.load %arg4[%c0_10, %c1_11, %c0_12, %c0_13] : memref<2x2x32x16xf32, #tpu.memory_space<vmem>>, vector<2x1x32x16xf32>
    %7 = vector.shape_cast %6 : vector<2x1x32x16xf32> to vector<2x32x16xf32>
    "tpu.trace_start"() <{level = 10 : i32, message = "umk,ukn->umn"}> : () -> ()
    %cst = arith.constant dense<0.000000e+00> : vector<2x32x16xf32>
    %8 = tpu.matmul %1, %5, %cst {dimension_numbers = #tpu.dot_dimension_numbers<[2], [1], [1], [2], [0, 0, 0, 1, 1, 2], [0], [0]>} : vector<2x32x32xf32>, vector<2x32x16xf32>, vector<2x32x16xf32> -> vector<2x32x16xf32>
    %cst_14 = arith.constant dense<0.000000e+00> : vector<2x32x16xf32>
    %9 = tpu.matmul %3, %7, %cst_14 {dimension_numbers = #tpu.dot_dimension_numbers<[2], [1], [1], [2], [0, 0, 0, 1, 1, 2], [0], [0]>} : vector<2x32x32xf32>, vector<2x32x16xf32>, vector<2x32x16xf32> -> vector<2x32x16xf32>
    %cst_15 = arith.constant dense<0.000000e+00> : vector<2x32x16xf32>
    %10 = tpu.matmul %1, %7, %cst_15 {dimension_numbers = #tpu.dot_dimension_numbers<[2], [1], [1], [2], [0, 0, 0, 1, 1, 2], [0], [0]>} : vector<2x32x32xf32>, vector<2x32x16xf32>, vector<2x32x16xf32> -> vector<2x32x16xf32>
    %cst_16 = arith.constant dense<0.000000e+00> : vector<2x32x16xf32>
    %11 = tpu.matmul %3, %5, %cst_16 {dimension_numbers = #tpu.dot_dimension_numbers<[2], [1], [1], [2], [0, 0, 0, 1, 1, 2], [0], [0]>} : vector<2x32x32xf32>, vector<2x32x16xf32>, vector<2x32x16xf32> -> vector<2x32x16xf32>
    "tpu.trace_stop"() : () -> ()
    %12 = arith.subf %8, %9 : vector<2x32x16xf32>
    %13 = arith.addf %10, %11 : vector<2x32x16xf32>
    %c0_17 = arith.constant 0 : index
    %c0_18 = arith.constant 0 : index
    %c0_19 = arith.constant 0 : index
    %c0_20 = arith.constant 0 : index
    %14 = vector.load %arg2[%c0_17, %c0_18, %c0_19, %c0_20] : memref<2x2x32x32xf32, #tpu.memory_space<vmem>>, vector<2x1x32x32xf32>
    %15 = vector.shape_cast %14 : vector<2x1x32x32xf32> to vector<2x32x32xf32>
    %c0_21 = arith.constant 0 : index
    %c1_22 = arith.constant 1 : index
    %c0_23 = arith.constant 0 : index
    %c0_24 = arith.constant 0 : index
    %16 = vector.load %arg2[%c0_21, %c1_22, %c0_23, %c0_24] : memref<2x2x32x32xf32, #tpu.memory_space<vmem>>, vector<2x1x32x32xf32>
    %17 = vector.shape_cast %16 : vector<2x1x32x32xf32> to vector<2x32x32xf32>
    "tpu.trace_start"() <{level = 10 : i32, message = "umk,ukn->umn"}> : () -> ()
    %cst_25 = arith.constant dense<0.000000e+00> : vector<2x32x16xf32>
    %18 = tpu.matmul %15, %12, %cst_25 {dimension_numbers = #tpu.dot_dimension_numbers<[2], [1], [1], [2], [0, 0, 0, 1, 1, 2], [0], [0]>} : vector<2x32x32xf32>, vector<2x32x16xf32>, vector<2x32x16xf32> -> vector<2x32x16xf32>
    %cst_26 = arith.constant dense<0.000000e+00> : vector<2x32x16xf32>
    %19 = tpu.matmul %17, %13, %cst_26 {dimension_numbers = #tpu.dot_dimension_numbers<[2], [1], [1], [2], [0, 0, 0, 1, 1, 2], [0], [0]>} : vector<2x32x32xf32>, vector<2x32x16xf32>, vector<2x32x16xf32> -> vector<2x32x16xf32>
    %cst_27 = arith.constant dense<0.000000e+00> : vector<2x32x16xf32>
    %20 = tpu.matmul %15, %13, %cst_27 {dimension_numbers = #tpu.dot_dimension_numbers<[2], [1], [1], [2], [0, 0, 0, 1, 1, 2], [0], [0]>} : vector<2x32x32xf32>, vector<2x32x16xf32>, vector<2x32x16xf32> -> vector<2x32x16xf32>
    %cst_28 = arith.constant dense<0.000000e+00> : vector<2x32x16xf32>
    %21 = tpu.matmul %17, %12, %cst_28 {dimension_numbers = #tpu.dot_dimension_numbers<[2], [1], [1], [2], [0, 0, 0, 1, 1, 2], [0], [0]>} : vector<2x32x32xf32>, vector<2x32x16xf32>, vector<2x32x16xf32> -> vector<2x32x16xf32>
    "tpu.trace_stop"() : () -> ()
    %22 = arith.subf %18, %19 : vector<2x32x16xf32>
    %23 = arith.addf %20, %21 : vector<2x32x16xf32>
    %c0_29 = arith.constant 0 : index
    %c0_30 = arith.constant 0 : index
    %c0_31 = arith.constant 0 : index
    %c0_32 = arith.constant 0 : index
    %24 = vector.load %arg1[%c0_29, %c0_30, %c0_31, %c0_32] : memref<2x2x32x32xf32, #tpu.memory_space<vmem>>, vector<2x1x32x32xf32>
    %25 = vector.shape_cast %24 : vector<2x1x32x32xf32> to vector<2x32x32xf32>
    %c0_33 = arith.constant 0 : index
    %c1_34 = arith.constant 1 : index
    %c0_35 = arith.constant 0 : index
    %c0_36 = arith.constant 0 : index
    %26 = vector.load %arg1[%c0_33, %c1_34, %c0_35, %c0_36] : memref<2x2x32x32xf32, #tpu.memory_space<vmem>>, vector<2x1x32x32xf32>
    %27 = vector.shape_cast %26 : vector<2x1x32x32xf32> to vector<2x32x32xf32>
    "tpu.trace_start"() <{level = 10 : i32, message = "umk,ukn->umn"}> : () -> ()
    %cst_37 = arith.constant dense<0.000000e+00> : vector<2x32x16xf32>
    %28 = tpu.matmul %25, %22, %cst_37 {dimension_numbers = #tpu.dot_dimension_numbers<[2], [1], [1], [2], [0, 0, 0, 1, 1, 2], [0], [0]>} : vector<2x32x32xf32>, vector<2x32x16xf32>, vector<2x32x16xf32> -> vector<2x32x16xf32>
    %cst_38 = arith.constant dense<0.000000e+00> : vector<2x32x16xf32>
    %29 = tpu.matmul %27, %23, %cst_38 {dimension_numbers = #tpu.dot_dimension_numbers<[2], [1], [1], [2], [0, 0, 0, 1, 1, 2], [0], [0]>} : vector<2x32x32xf32>, vector<2x32x16xf32>, vector<2x32x16xf32> -> vector<2x32x16xf32>
    %cst_39 = arith.constant dense<0.000000e+00> : vector<2x32x16xf32>
    %30 = tpu.matmul %25, %23, %cst_39 {dimension_numbers = #tpu.dot_dimension_numbers<[2], [1], [1], [2], [0, 0, 0, 1, 1, 2], [0], [0]>} : vector<2x32x32xf32>, vector<2x32x16xf32>, vector<2x32x16xf32> -> vector<2x32x16xf32>
    %cst_40 = arith.constant dense<0.000000e+00> : vector<2x32x16xf32>
    %31 = tpu.matmul %27, %22, %cst_40 {dimension_numbers = #tpu.dot_dimension_numbers<[2], [1], [1], [2], [0, 0, 0, 1, 1, 2], [0], [0]>} : vector<2x32x32xf32>, vector<2x32x16xf32>, vector<2x32x16xf32> -> vector<2x32x16xf32>
    "tpu.trace_stop"() : () -> ()
    %32 = arith.subf %28, %29 : vector<2x32x16xf32>
    %33 = arith.addf %30, %31 : vector<2x32x16xf32>
    %c0_41 = arith.constant 0 : index
    %c0_42 = arith.constant 0 : index
    %c0_43 = arith.constant 0 : index
    %c0_44 = arith.constant 0 : index
    %34 = vector.load %arg5[%c0_41, %c0_42, %c0_43, %c0_44] : memref<2x2x32x16xf32, #tpu.memory_space<vmem>>, vector<2x1x32x16xf32>
    %35 = vector.shape_cast %34 : vector<2x1x32x16xf32> to vector<2x32x16xf32>
    %36 = vector.shape_cast %32 : vector<2x32x16xf32> to vector<2x1x32x16xf32>
    tpu.vector_store %arg5[%c0_41, %c0_42, %c0_43, %c0_44], %36 {strides = array<i32>} : memref<2x2x32x16xf32, #tpu.memory_space<vmem>>, vector<2x1x32x16xf32>,
    %c0_45 = arith.constant 0 : index
    %c1_46 = arith.constant 1 : index
    %c0_47 = arith.constant 0 : index
    %c0_48 = arith.constant 0 : index
    %37 = vector.load %arg5[%c0_45, %c1_46, %c0_47, %c0_48] : memref<2x2x32x16xf32, #tpu.memory_space<vmem>>, vector<2x1x32x16xf32>
    %38 = vector.shape_cast %37 : vector<2x1x32x16xf32> to vector<2x32x16xf32>
    %39 = vector.shape_cast %33 : vector<2x32x16xf32> to vector<2x1x32x16xf32>
    tpu.vector_store %arg5[%c0_45, %c1_46, %c0_47, %c0_48], %39 {strides = array<i32>} : memref<2x2x32x16xf32, #tpu.memory_space<vmem>>, vector<2x1x32x16xf32>,
    return
  }
  func.func @transform_0(%arg0: i32) -> (i32, i32, i32, i32) {
    %c0_i32 = arith.constant 0 : i32
    %c0_i32_0 = arith.constant 0 : i32
    %c0_i32_1 = arith.constant 0 : i32
    %c0_i32_2 = arith.constant 0 : i32
    return %arg0, %c0_i32, %c0_i32_0, %c0_i32_1 : i32, i32, i32, i32
  }
  func.func @transform_1(%arg0: i32) -> (i32, i32, i32, i32) {
    %c0_i32 = arith.constant 0 : i32
    %c0_i32_0 = arith.constant 0 : i32
    %c0_i32_1 = arith.constant 0 : i32
    %c0_i32_2 = arith.constant 0 : i32
    return %arg0, %c0_i32, %c0_i32_0, %c0_i32_1 : i32, i32, i32, i32
  }
  func.func @transform_2(%arg0: i32) -> (i32, i32, i32, i32) {
    %c0_i32 = arith.constant 0 : i32
    %c0_i32_0 = arith.constant 0 : i32
    %c0_i32_1 = arith.constant 0 : i32
    %c0_i32_2 = arith.constant 0 : i32
    return %arg0, %c0_i32, %c0_i32_0, %c0_i32_1 : i32, i32, i32, i32
  }
  func.func @transform_3(%arg0: i32) -> (i32, i32, i32, i32) {
    %c0_i32 = arith.constant 0 : i32
    %c0_i32_0 = arith.constant 0 : i32
    %c0_i32_1 = arith.constant 0 : i32
    %c0_i32_2 = arith.constant 0 : i32
    return %arg0, %c0_i32, %c0_i32_0, %c0_i32_1 : i32, i32, i32, i32
  }
  func.func @transform_4(%arg0: i32) -> (i32, i32, i32, i32) {
    %c0_i32 = arith.constant 0 : i32
    %c0_i32_0 = arith.constant 0 : i32
    %c0_i32_1 = arith.constant 0 : i32
    %c0_i32_2 = arith.constant 0 : i32
    return %arg0, %c0_i32, %c0_i32_0, %c0_i32_1 : i32, i32, i32, i32
  }
}

</mosaic_0001>

<llo_original>
// kernel: tpu_custom_call.1
$region0: #{tpu_custom_call.1}
  #allocation0 [shape = 'u32[]', space=smem, size = 0x4, offset = 0x4, fixed_abs, tag = 'smem constant byte address 0x4 - core index']
  #allocation1 [shape = 'u32[144,128]{1,0:T(1,128)}', space=vmem, size = 0x12000, scoped, tag = 'internal scratch']
  %s0 = inlined_call_operand.vmem [shape: f32[2,2,32,32], index: 0, kind: input, shape index: {}]
  %s1 = inlined_call_operand.hbm [shape: f32[2,2,32,32], index: 1, kind: input, shape index: {}]
  %s2 = inlined_call_operand.hbm [shape: f32[2,2,32,32], index: 2, kind: input, shape index: {}]
  %s3 = inlined_call_operand.vmem [shape: f32[2,2,32,16], index: 3, kind: input, shape index: {}]
  %s4 = inlined_call_operand.vmem [shape: f32[2,2,32,16], index: 4, kind: output, shape index: {}]
  %s5 = sld [smem:[#allocation0]]
  $region34: #{tpu_custom_call.1} parent=0
    _
  %s7 = ssub.s32 1, %s5
  %s8 = scalar_select 0, %s7, %s5
  $region1: #{tpu_custom_call.1} parent=0
    #allocation2 [shape = 'u8[65536]{0}', space=vmem, size = 0x10000, scoped, tag = 'input window, operand 1, single buffered']
    #allocation3 [shape = 's32[1]{0}', space=sflag, size = 0x4, scoped, tag = 'scoped memory for tpu_custom_call.1']
    #allocation4 [shape = 'u8[65536]{0}', space=vmem, size = 0x10000, scoped, tag = 'input window, operand 2, single buffered']
    #allocation5 [shape = 's32[1]{0}', space=sflag, size = 0x4, scoped, tag = 'scoped memory for tpu_custom_call.1']
    %9 = vsyncpa [#allocation3], 0
    %10 = vsyncpa [#allocation5], 0
    // Predicated region
    $region2: #{tpu_custom_call.1} parent=1 // pred_check
      _
    $region3: #{tpu_custom_call.1} parent=1 // pred_check_branch
      %12 = sbr.rel (0) target = $region5
    $region4: #{tpu_custom_call.1} parent=1 // pred_region
      _
    $region5: #{tpu_custom_call.1} parent=1 // pred_fallthru
      _
    // Predicated region
    $region6: #{tpu_custom_call.1} parent=1 // pred_check
      _
    $region7: #{tpu_custom_call.1} parent=1 // pred_check_branch
      %14 = sbr.rel (0) target = $region9
    $region8: #{tpu_custom_call.1} parent=1 // pred_region
      %s16 = ssub.s32 2048, 2048
      %17 = vsyncadd [#allocation3], %s16
      %s18 = sshll.u32 [#allocation2], 4
      %s19 = int_to_ptr.vmem [resolvable:$true] %s18
      %24 = dma.hbm_to_vmem [thread:$0]  %s1, 2048, %s19, [#allocation3], 128, 128, 8
    $region9: #{tpu_custom_call.1} parent=1 // pred_fallthru
      _
    // Predicated region
    $region10: #{tpu_custom_call.1} parent=1 // pred_check
      _
    $region11: #{tpu_custom_call.1} parent=1 // pred_check_branch
      %26 = sbr.rel (0) target = $region13
    $region12: #{tpu_custom_call.1} parent=1 // pred_region
      %s28 = ssub.s32 2048, 2048
      %29 = vsyncadd [#allocation5], %s28
      %s30 = sshll.u32 [#allocation4], 4
      %s31 = int_to_ptr.vmem [resolvable:$true] %s30
      %36 = dma.hbm_to_vmem [thread:$0]  %s2, 2048, %s31, [#allocation5], 128, 128, 8
    $region13: #{tpu_custom_call.1} parent=1 // pred_fallthru
      _
    // Predicated region
    $region14: #{tpu_custom_call.1} parent=1 // pred_check
      _
    $region15: #{tpu_custom_call.1} parent=1 // pred_check_branch
      %38 = sbr.rel (0) target = $region17
    $region16: #{tpu_custom_call.1} parent=1 // pred_region
      _
    $region17: #{tpu_custom_call.1} parent=1 // pred_fallthru
      _
    // Predicated region
    $region18: #{tpu_custom_call.1} parent=1 // pred_check
      _
    $region19: #{tpu_custom_call.1} parent=1 // pred_check_branch
      %40 = sbr.rel (0) target = $region21
    $region20: #{tpu_custom_call.1} parent=1 // pred_region
      %41 = dma.done [#allocation3], 2048
    $region21: #{tpu_custom_call.1} parent=1 // pred_fallthru
      _
    // Predicated region
    $region22: #{tpu_custom_call.1} parent=1 // pred_check
      _
    $region23: #{tpu_custom_call.1} parent=1 // pred_check_branch
      %43 = sbr.rel (0) target = $region25
    $region24: #{tpu_custom_call.1} parent=1 // pred_region
      %44 = dma.done [#allocation5], 2048
    $region25: #{tpu_custom_call.1} parent=1 // pred_fallthru
      _
    %v45 = vld [vmem:[#allocation4] sm:$0xff]
    %v46 = vld [vmem:[#allocation4 + $0x8] sm:$0xff]
    %v47 = vld [vmem:[#allocation4 + $0x10] sm:$0xff]
    %v48 = vld [vmem:[#allocation4 + $0x18] sm:$0xff]
    %v49 = vld [vmem:[#allocation4 + $0x40] sm:$0xff]
    %v50 = vld [vmem:[#allocation4 + $0x48] sm:$0xff]
    %v51 = vld [vmem:[#allocation4 + $0x50] sm:$0xff]
    %v52 = vld [vmem:[#allocation4 + $0x58] sm:$0xff]
    %s53 = scalar_lea.vmem [#allocation4], 32
    %v54 = vld [vmem:[%s53] sm:$0xff]
    %v55 = vld [vmem:[%s53 + $0x8] sm:$0xff]
    %v56 = vld [vmem:[%s53 + $0x10] sm:$0xff]
    %v57 = vld [vmem:[%s53 + $0x18] sm:$0xff]
    %v58 = vld [vmem:[%s53 + $0x40] sm:$0xff]
    %v59 = vld [vmem:[%s53 + $0x48] sm:$0xff]
    %v60 = vld [vmem:[%s53 + $0x50] sm:$0xff]
    %v61 = vld [vmem:[%s53 + $0x58] sm:$0xff]
    %v62 = vld [vmem:[%s3] sm:$0xff]
    %v63 = vld [vmem:[%s3 + $0x8] sm:$0xff]
    %v64 = vld [vmem:[%s3 + $0x10] sm:$0xff]
    %v65 = vld [vmem:[%s3 + $0x18] sm:$0xff]
    %v66 = vld [vmem:[%s3 + $0x40] sm:$0xff]
    %v67 = vld [vmem:[%s3 + $0x48] sm:$0xff]
    %v68 = vld [vmem:[%s3 + $0x50] sm:$0xff]
    %v69 = vld [vmem:[%s3 + $0x58] sm:$0xff]
    %s70 = scalar_lea.vmem %s3, 32
    %v71 = vld [vmem:[%s70] sm:$0xff]
    %v72 = vld [vmem:[%s70 + $0x8] sm:$0xff]
    %v73 = vld [vmem:[%s70 + $0x10] sm:$0xff]
    %v74 = vld [vmem:[%s70 + $0x18] sm:$0xff]
    %v75 = vld [vmem:[%s70 + $0x40] sm:$0xff]
    %v76 = vld [vmem:[%s70 + $0x48] sm:$0xff]
    %v77 = vld [vmem:[%s70 + $0x50] sm:$0xff]
    %v78 = vld [vmem:[%s70 + $0x58] sm:$0xff]
    %vm79 = vcmask 261120
    %v81 = vsel %vm79, %v45, 0
    %v84 = vsel %vm79, %v46, 0
    %v87 = vsel %vm79, %v47, 0
    %v90 = vsel %vm79, %v48, 0
    %92 = vmatprep.subr.mxu0 0.0
    %93 = vmatpush1.msra.mxu0 %v62
    %94 = vmatprep.subr.mxu0 0.0
    %95 = vmatpush1.msra.mxu0 %v63
    %96 = vmatprep.subr.mxu0 0.0
    %97 = vmatpush1.msra.mxu0 %v64
    %98 = vmatprep.subr.mxu0 0.0
    %99 = vmatpush1.msra.mxu0 %v65
    %100 = vmatprep.subr.mxu0 0.0
    %101 = vmatpush1.msra.mxu0 0.0
    %102 = vmatprep.subr.mxu0 0.0
    %103 = vmatpush1.msra.mxu0 0.0
    %104 = vmatprep.subr.mxu0 0.0
    %105 = vmatpush1.msra.mxu0 0.0
    %106 = vmatprep.subr.mxu0 0.0
    %107 = vmatpush1.msra.mxu0 0.0
    %108 = vmatprep.subr.mxu0 0.0
    %109 = vmatpush1.msra.mxu0 0.0
    %110 = vmatprep.subr.mxu0 0.0
    %111 = vmatpush1.msra.mxu0 0.0
    %112 = vmatprep.subr.mxu0 0.0
    %113 = vmatpush1.msra.mxu0 0.0
    %114 = vmatprep.subr.mxu0 0.0
    %115 = vmatpush1.msra.mxu0 0.0
    %116 = vmatprep.subr.mxu0 0.0
    %117 = vmatpush1.msra.mxu0 0.0
    %118 = vmatprep.subr.mxu0 0.0
    %119 = vmatpush1.msra.mxu0 0.0
    %120 = vmatprep.subr.mxu0 0.0
    %121 = vmatpush1.msra.mxu0 0.0
    %122 = vmatprep.subr.mxu0 0.0
    %123 = vmatpush1.msra.mxu0 0.0
    %124 = vmatprep.subr.mxu0 0.0
    %125 = vmatpush1.msra.mxu0 0.0
    %126 = vmatprep.subr.mxu0 0.0
    %127 = vmatpush1.msra.mxu0 0.0
    %128 = vmatprep.subr.mxu0 0.0
    %129 = vmatpush1.msra.mxu0 0.0
    %130 = vmatprep.subr.mxu0 0.0
    %131 = vmatpush1.msra.mxu0 0.0
    %132 = vmatprep.subr.mxu0 0.0
    %133 = vmatpush1.msra.mxu0 0.0
    %134 = vmatprep.subr.mxu0 0.0
    %135 = vmatpush1.msra.mxu0 0.0
    %136 = vmatprep.subr.mxu0 0.0
    %137 = vmatpush1.msra.mxu0 0.0
    %138 = vmatprep.subr.mxu0 0.0
    %139 = vmatpush1.msra.mxu0 0.0
    %140 = vmatprep.subr.mxu0 0.0
    %141 = vmatpush1.msra.mxu0 0.0
    %142 = vmatprep.subr.mxu0 0.0
    %143 = vmatpush1.msra.mxu0 0.0
    %144 = vmatprep.subr.mxu0 0.0
    %145 = vmatpush1.msra.mxu0 0.0
    %146 = vmatprep.subr.mxu0 0.0
    %147 = vmatpush1.msra.mxu0 0.0
    %148 = vmatprep.subr.mxu0 0.0
    %149 = vmatpush1.msra.mxu0 0.0
    %150 = vmatprep.subr.mxu0 0.0
    %151 = vmatpush1.msra.mxu0 0.0
    %152 = vmatprep.subr.mxu0 0.0
    %153 = vmatpush1.msra.mxu0 0.0
    %154 = vmatprep.subr.mxu0 0.0
    %155 = vmatpush1.msra.mxu0 0.0
    %156 = vmatprep.mubr.f32.mxu0 0.0
    %157 = vmatmul.mubr.f32.gmra.mrb[0].mxu0 %v81
    %v158 = vpop.f32.mrb[0].mxu0
    %v159 = vadd.f32 0.0, %v158
    %v160 = vpop.f32.mrb[0].mxu0
    %161 = vmatprep.mubr.f32.mxu0 0.0
    %162 = vmatmul.mubr.f32.gmra.mrb[0].mxu0 %v84
    %v163 = vpop.f32.mrb[0].mxu0
    %v164 = vadd.f32 0.0, %v163
    %v165 = vpop.f32.mrb[0].mxu0
    %166 = vmatprep.mubr.f32.mxu0 0.0
    %167 = vmatmul.mubr.f32.gmra.mrb[0].mxu0 %v87
    %v168 = vpop.f32.mrb[0].mxu0
    %v169 = vadd.f32 0.0, %v168
    %v170 = vpop.f32.mrb[0].mxu0
    %171 = vmatprep.mubr.f32.mxu0 0.0
    %172 = vmatmul.mubr.f32.gmra.mrb[0].mxu0 %v90
    %v173 = vpop.f32.mrb[0].mxu0
    %v174 = vadd.f32 0.0, %v173
    %v175 = vpop.f32.mrb[0].mxu0
    %176 = vdwg.mxu0
    %v178 = vsel %vm79, %v49, 0
    %v181 = vsel %vm79, %v50, 0
    %v184 = vsel %vm79, %v51, 0
    %v187 = vsel %vm79, %v52, 0
    %189 = vmatprep.subr.mxu0 0.0
    %190 = vmatpush1.msra.mxu0 %v66
    %191 = vmatprep.subr.mxu0 0.0
    %192 = vmatpush1.msra.mxu0 %v67
    %193 = vmatprep.subr.mxu0 0.0
    %194 = vmatpush1.msra.mxu0 %v68
    %195 = vmatprep.subr.mxu0 0.0
    %196 = vmatpush1.msra.mxu0 %v69
    %197 = vmatprep.subr.mxu0 0.0
    %198 = vmatpush1.msra.mxu0 0.0
    %199 = vmatprep.subr.mxu0 0.0
    %200 = vmatpush1.msra.mxu0 0.0
    %201 = vmatprep.subr.mxu0 0.0
    %202 = vmatpush1.msra.mxu0 0.0
    %203 = vmatprep.subr.mxu0 0.0
    %204 = vmatpush1.msra.mxu0 0.0
    %205 = vmatprep.subr.mxu0 0.0
    %206 = vmatpush1.msra.mxu0 0.0
    %207 = vmatprep.subr.mxu0 0.0
    %208 = vmatpush1.msra.mxu0 0.0
    %209 = vmatprep.subr.mxu0 0.0
    %210 = vmatpush1.msra.mxu0 0.0
    %211 = vmatprep.subr.mxu0 0.0
    %212 = vmatpush1.msra.mxu0 0.0
    %213 = vmatprep.subr.mxu0 0.0
    %214 = vmatpush1.msra.mxu0 0.0
    %215 = vmatprep.subr.mxu0 0.0
    %216 = vmatpush1.msra.mxu0 0.0
    %217 = vmatprep.subr.mxu0 0.0
    %218 = vmatpush1.msra.mxu0 0.0
    %219 = vmatprep.subr.mxu0 0.0
    %220 = vmatpush1.msra.mxu0 0.0
    %221 = vmatprep.subr.mxu0 0.0
    %222 = vmatpush1.msra.mxu0 0.0
    %223 = vmatprep.subr.mxu0 0.0
    %224 = vmatpush1.msra.mxu0 0.0
    %225 = vmatprep.subr.mxu0 0.0
    %226 = vmatpush1.msra.mxu0 0.0
    %227 = vmatprep.subr.mxu0 0.0
    %228 = vmatpush1.msra.mxu0 0.0
    %229 = vmatprep.subr.mxu0 0.0
    %230 = vmatpush1.msra.mxu0 0.0
    %231 = vmatprep.subr.mxu0 0.0
    %232 = vmatpush1.msra.mxu0 0.0
    %233 = vmatprep.subr.mxu0 0.0
    %234 = vmatpush1.msra.mxu0 0.0
    %235 = vmatprep.subr.mxu0 0.0
    %236 = vmatpush1.msra.mxu0 0.0
    %237 = vmatprep.subr.mxu0 0.0
    %238 = vmatpush1.msra.mxu0 0.0
    %239 = vmatprep.subr.mxu0 0.0
    %240 = vmatpush1.msra.mxu0 0.0
    %241 = vmatprep.subr.mxu0 0.0
    %242 = vmatpush1.msra.mxu0 0.0
    %243 = vmatprep.subr.mxu0 0.0
    %244 = vmatpush1.msra.mxu0 0.0
    %245 = vmatprep.subr.mxu0 0.0
    %246 = vmatpush1.msra.mxu0 0.0
    %247 = vmatprep.subr.mxu0 0.0
    %248 = vmatpush1.msra.mxu0 0.0
    %249 = vmatprep.subr.mxu0 0.0
    %250 = vmatpush1.msra.mxu0 0.0
    %251 = vmatprep.subr.mxu0 0.0
    %252 = vmatpush1.msra.mxu0 0.0
    %253 = vmatprep.mubr.f32.mxu0 0.0
    %254 = vmatmul.mubr.f32.gmra.mrb[0].mxu0 %v178
    %v255 = vpop.f32.mrb[0].mxu0
    %v256 = vadd.f32 0.0, %v255
    %v257 = vpop.f32.mrb[0].mxu0
    %258 = vmatprep.mubr.f32.mxu0 0.0
    %259 = vmatmul.mubr.f32.gmra.mrb[0].mxu0 %v181
    %v260 = vpop.f32.mrb[0].mxu0
    %v261 = vadd.f32 0.0, %v260
    %v262 = vpop.f32.mrb[0].mxu0
    %263 = vmatprep.mubr.f32.mxu0 0.0
    %264 = vmatmul.mubr.f32.gmra.mrb[0].mxu0 %v184
    %v265 = vpop.f32.mrb[0].mxu0
    %v266 = vadd.f32 0.0, %v265
    %v267 = vpop.f32.mrb[0].mxu0
    %268 = vmatprep.mubr.f32.mxu0 0.0
    %269 = vmatmul.mubr.f32.gmra.mrb[0].mxu0 %v187
    %v270 = vpop.f32.mrb[0].mxu0
    %v271 = vadd.f32 0.0, %v270
    %v272 = vpop.f32.mrb[0].mxu0
    %273 = vdwg.mxu0
    %v275 = vsel %vm79, %v54, 0
    %v278 = vsel %vm79, %v55, 0
    %v281 = vsel %vm79, %v56, 0
    %v284 = vsel %vm79, %v57, 0
    %286 = vmatprep.subr.mxu0 0.0
    %287 = vmatpush1.msra.mxu0 %v71
    %288 = vmatprep.subr.mxu0 0.0
    %289 = vmatpush1.msra.mxu0 %v72
    %290 = vmatprep.subr.mxu0 0.0
    %291 = vmatpush1.msra.mxu0 %v73
    %292 = vmatprep.subr.mxu0 0.0
    %293 = vmatpush1.msra.mxu0 %v74
    %294 = vmatprep.subr.mxu0 0.0
    %295 = vmatpush1.msra.mxu0 0.0
    %296 = vmatprep.subr.mxu0 0.0
    %297 = vmatpush1.msra.mxu0 0.0
    %298 = vmatprep.subr.mxu0 0.0
    %299 = vmatpush1.msra.mxu0 0.0
    %300 = vmatprep.subr.mxu0 0.0
    %301 = vmatpush1.msra.mxu0 0.0
    %302 = vmatprep.subr.mxu0 0.0
    %303 = vmatpush1.msra.mxu0 0.0
    %304 = vmatprep.subr.mxu0 0.0
    %305 = vmatpush1.msra.mxu0 0.0
    %306 = vmatprep.subr.mxu0 0.0
    %307 = vmatpush1.msra.mxu0 0.0
    %308 = vmatprep.subr.mxu0 0.0
    %309 = vmatpush1.msra.mxu0 0.0
    %310 = vmatprep.subr.mxu0 0.0
    %311 = vmatpush1.msra.mxu0 0.0
    %312 = vmatprep.subr.mxu0 0.0
    %313 = vmatpush1.msra.mxu0 0.0
    %314 = vmatprep.subr.mxu0 0.0
    %315 = vmatpush1.msra.mxu0 0.0
    %316 = vmatprep.subr.mxu0 0.0
    %317 = vmatpush1.msra.mxu0 0.0
    %318 = vmatprep.subr.mxu0 0.0
    %319 = vmatpush1.msra.mxu0 0.0
    %320 = vmatprep.subr.mxu0 0.0
    %321 = vmatpush1.msra.mxu0 0.0
    %322 = vmatprep.subr.mxu0 0.0
    %323 = vmatpush1.msra.mxu0 0.0
    %324 = vmatprep.subr.mxu0 0.0
    %325 = vmatpush1.msra.mxu0 0.0
    %326 = vmatprep.subr.mxu0 0.0
    %327 = vmatpush1.msra.mxu0 0.0
    %328 = vmatprep.subr.mxu0 0.0
    %329 = vmatpush1.msra.mxu0 0.0
    %330 = vmatprep.subr.mxu0 0.0
    %331 = vmatpush1.msra.mxu0 0.0
    %332 = vmatprep.subr.mxu0 0.0
    %333 = vmatpush1.msra.mxu0 0.0
    %334 = vmatprep.subr.mxu0 0.0
    %335 = vmatpush1.msra.mxu0 0.0
    %336 = vmatprep.subr.mxu0 0.0
    %337 = vmatpush1.msra.mxu0 0.0
    %338 = vmatprep.subr.mxu0 0.0
    %339 = vmatpush1.msra.mxu0 0.0
    %340 = vmatprep.subr.mxu0 0.0
    %341 = vmatpush1.msra.mxu0 0.0
    %342 = vmatprep.subr.mxu0 0.0
    %343 = vmatpush1.msra.mxu0 0.0
    %344 = vmatprep.subr.mxu0 0.0
    %345 = vmatpush1.msra.mxu0 0.0
    %346 = vmatprep.subr.mxu0 0.0
    %347 = vmatpush1.msra.mxu0 0.0
    %348 = vmatprep.subr.mxu0 0.0
    %349 = vmatpush1.msra.mxu0 0.0
    %350 = vmatprep.mubr.f32.mxu0 0.0
    %351 = vmatmul.mubr.f32.gmra.mrb[0].mxu0 %v275
    %v352 = vpop.f32.mrb[0].mxu0
    %v353 = vadd.f32 0.0, %v352
    %v354 = vpop.f32.mrb[0].mxu0
    %355 = vmatprep.mubr.f32.mxu0 0.0
    %356 = vmatmul.mubr.f32.gmra.mrb[0].mxu0 %v278
    %v357 = vpop.f32.mrb[0].mxu0
    %v358 = vadd.f32 0.0, %v357
    %v359 = vpop.f32.mrb[0].mxu0
    %360 = vmatprep.mubr.f32.mxu0 0.0
    %361 = vmatmul.mubr.f32.gmra.mrb[0].mxu0 %v281
    %v362 = vpop.f32.mrb[0].mxu0
    %v363 = vadd.f32 0.0, %v362
    %v364 = vpop.f32.mrb[0].mxu0
    %365 = vmatprep.mubr.f32.mxu0 0.0
    %366 = vmatmul.mubr.f32.gmra.mrb[0].mxu0 %v284
    %v367 = vpop.f32.mrb[0].mxu0
    %v368 = vadd.f32 0.0, %v367
    %v369 = vpop.f32.mrb[0].mxu0
    %370 = vdwg.mxu0
    %v372 = vsel %vm79, %v58, 0
    %v375 = vsel %vm79, %v59, 0
    %v378 = vsel %vm79, %v60, 0
    %v381 = vsel %vm79, %v61, 0
    %383 = vmatprep.subr.mxu0 0.0
    %384 = vmatpush1.msra.mxu0 %v75
    %385 = vmatprep.subr.mxu0 0.0
    %386 = vmatpush1.msra.mxu0 %v76
    %387 = vmatprep.subr.mxu0 0.0
    %388 = vmatpush1.msra.mxu0 %v77
    %389 = vmatprep.subr.mxu0 0.0
    %390 = vmatpush1.msra.mxu0 %v78
    %391 = vmatprep.subr.mxu0 0.0
    %392 = vmatpush1.msra.mxu0 0.0
    %393 = vmatprep.subr.mxu0 0.0
    %394 = vmatpush1.msra.mxu0 0.0
    %395 = vmatprep.subr.mxu0 0.0
    %396 = vmatpush1.msra.mxu0 0.0
    %397 = vmatprep.subr.mxu0 0.0
    %398 = vmatpush1.msra.mxu0 0.0
    %399 = vmatprep.subr.mxu0 0.0
    %400 = vmatpush1.msra.mxu0 0.0
    %401 = vmatprep.subr.mxu0 0.0
    %402 = vmatpush1.msra.mxu0 0.0
    %403 = vmatprep.subr.mxu0 0.0
    %404 = vmatpush1.msra.mxu0 0.0
    %405 = vmatprep.subr.mxu0 0.0
    %406 = vmatpush1.msra.mxu0 0.0
    %407 = vmatprep.subr.mxu0 0.0
    %408 = vmatpush1.msra.mxu0 0.0
    %409 = vmatprep.subr.mxu0 0.0
    %410 = vmatpush1.msra.mxu0 0.0
    %411 = vmatprep.subr.mxu0 0.0
    %412 = vmatpush1.msra.mxu0 0.0
    %413 = vmatprep.subr.mxu0 0.0
    %414 = vmatpush1.msra.mxu0 0.0
    %415 = vmatprep.subr.mxu0 0.0
    %416 = vmatpush1.msra.mxu0 0.0
    %417 = vmatprep.subr.mxu0 0.0
    %418 = vmatpush1.msra.mxu0 0.0
    %419 = vmatprep.subr.mxu0 0.0
    %420 = vmatpush1.msra.mxu0 0.0
    %421 = vmatprep.subr.mxu0 0.0
    %422 = vmatpush1.msra.mxu0 0.0
    %423 = vmatprep.subr.mxu0 0.0
    %424 = vmatpush1.msra.mxu0 0.0
    %425 = vmatprep.subr.mxu0 0.0
    %426 = vmatpush1.msra.mxu0 0.0
    %427 = vmatprep.subr.mxu0 0.0
    %428 = vmatpush1.msra.mxu0 0.0
    %429 = vmatprep.subr.mxu0 0.0
    %430 = vmatpush1.msra.mxu0 0.0
    %431 = vmatprep.subr.mxu0 0.0
    %432 = vmatpush1.msra.mxu0 0.0
    %433 = vmatprep.subr.mxu0 0.0
    %434 = vmatpush1.msra.mxu0 0.0
    %435 = vmatprep.subr.mxu0 0.0
    %436 = vmatpush1.msra.mxu0 0.0
    %437 = vmatprep.subr.mxu0 0.0
    %438 = vmatpush1.msra.mxu0 0.0
    %439 = vmatprep.subr.mxu0 0.0
    %440 = vmatpush1.msra.mxu0 0.0
    %441 = vmatprep.subr.mxu0 0.0
    %442 = vmatpush1.msra.mxu0 0.0
    %443 = vmatprep.subr.mxu0 0.0
    %444 = vmatpush1.msra.mxu0 0.0
    %445 = vmatprep.subr.mxu0 0.0
    %446 = vmatpush1.msra.mxu0 0.0
    %447 = vmatprep.mubr.f32.mxu0 0.0
    %448 = vmatmul.mubr.f32.gmra.mrb[0].mxu0 %v372
    %v449 = vpop.f32.mrb[0].mxu0
    %v450 = vadd.f32 0.0, %v449
    %v451 = vpop.f32.mrb[0].mxu0
    %452 = vmatprep.mubr.f32.mxu0 0.0
    %453 = vmatmul.mubr.f32.gmra.mrb[0].mxu0 %v375
    %v454 = vpop.f32.mrb[0].mxu0
    %v455 = vadd.f32 0.0, %v454
    %v456 = vpop.f32.mrb[0].mxu0
    %457 = vmatprep.mubr.f32.mxu0 0.0
    %458 = vmatmul.mubr.f32.gmra.mrb[0].mxu0 %v378
    %v459 = vpop.f32.mrb[0].mxu0
    %v460 = vadd.f32 0.0, %v459
    %v461 = vpop.f32.mrb[0].mxu0
    %462 = vmatprep.mubr.f32.mxu0 0.0
    %463 = vmatmul.mubr.f32.gmra.mrb[0].mxu0 %v381
    %v464 = vpop.f32.mrb[0].mxu0
    %v465 = vadd.f32 0.0, %v464
    %v466 = vpop.f32.mrb[0].mxu0
    %467 = vdwg.mxu0
    %468 = vmatprep.subr.mxu0 0.0
    %469 = vmatpush1.msra.mxu0 %v62
    %470 = vmatprep.subr.mxu0 0.0
    %471 = vmatpush1.msra.mxu0 %v63
    %472 = vmatprep.subr.mxu0 0.0
    %473 = vmatpush1.msra.mxu0 %v64
    %474 = vmatprep.subr.mxu0 0.0
    %475 = vmatpush1.msra.mxu0 %v65
    %476 = vmatprep.subr.mxu0 0.0
    %477 = vmatpush1.msra.mxu0 0.0
    %478 = vmatprep.subr.mxu0 0.0
    %479 = vmatpush1.msra.mxu0 0.0
    %480 = vmatprep.subr.mxu0 0.0
    %481 = vmatpush1.msra.mxu0 0.0
    %482 = vmatprep.subr.mxu0 0.0
    %483 = vmatpush1.msra.mxu0 0.0
    %484 = vmatprep.subr.mxu0 0.0
    %485 = vmatpush1.msra.mxu0 0.0
    %486 = vmatprep.subr.mxu0 0.0
    %487 = vmatpush1.msra.mxu0 0.0
    %488 = vmatprep.subr.mxu0 0.0
    %489 = vmatpush1.msra.mxu0 0.0
    %490 = vmatprep.subr.mxu0 0.0
    %491 = vmatpush1.msra.mxu0 0.0
    %492 = vmatprep.subr.mxu0 0.0
    %493 = vmatpush1.msra.mxu0 0.0
    %494 = vmatprep.subr.mxu0 0.0
    %495 = vmatpush1.msra.mxu0 0.0
    %496 = vmatprep.subr.mxu0 0.0
    %497 = vmatpush1.msra.mxu0 0.0
    %498 = vmatprep.subr.mxu0 0.0
    %499 = vmatpush1.msra.mxu0 0.0
    %500 = vmatprep.subr.mxu0 0.0
    %501 = vmatpush1.msra.mxu0 0.0
    %502 = vmatprep.subr.mxu0 0.0
    %503 = vmatpush1.msra.mxu0 0.0
    %504 = vmatprep.subr.mxu0 0.0
    %505 = vmatpush1.msra.mxu0 0.0
    %506 = vmatprep.subr.mxu0 0.0
    %507 = vmatpush1.msra.mxu0 0.0
    %508 = vmatprep.subr.mxu0 0.0
    %509 = vmatpush1.msra.mxu0 0.0
    %510 = vmatprep.subr.mxu0 0.0
    %511 = vmatpush1.msra.mxu0 0.0
    %512 = vmatprep.subr.mxu0 0.0
    %513 = vmatpush1.msra.mxu0 0.0
    %514 = vmatprep.subr.mxu0 0.0
    %515 = vmatpush1.msra.mxu0 0.0
    %516 = vmatprep.subr.mxu0 0.0
    %517 = vmatpush1.msra.mxu0 0.0
    %518 = vmatprep.subr.mxu0 0.0
    %519 = vmatpush1.msra.mxu0 0.0
    %520 = vmatprep.subr.mxu0 0.0
    %521 = vmatpush1.msra.mxu0 0.0
    %522 = vmatprep.subr.mxu0 0.0
    %523 = vmatpush1.msra.mxu0 0.0
    %524 = vmatprep.subr.mxu0 0.0
    %525 = vmatpush1.msra.mxu0 0.0
    %526 = vmatprep.subr.mxu0 0.0
    %527 = vmatpush1.msra.mxu0 0.0
    %528 = vmatprep.subr.mxu0 0.0
    %529 = vmatpush1.msra.mxu0 0.0
    %530 = vmatprep.subr.mxu0 0.0
    %531 = vmatpush1.msra.mxu0 0.0
    %532 = vmatprep.mubr.f32.mxu0 0.0
    %533 = vmatmul.mubr.f32.gmra.mrb[0].mxu0 %v275
    %v534 = vpop.f32.mrb[0].mxu0
    %v535 = vadd.f32 0.0, %v534
    %v536 = vpop.f32.mrb[0].mxu0
    %537 = vmatprep.mubr.f32.mxu0 0.0
    %538 = vmatmul.mubr.f32.gmra.mrb[0].mxu0 %v278
    %v539 = vpop.f32.mrb[0].mxu0
    %v540 = vadd.f32 0.0, %v539
    %v541 = vpop.f32.mrb[0].mxu0
    %542 = vmatprep.mubr.f32.mxu0 0.0
    %543 = vmatmul.mubr.f32.gmra.mrb[0].mxu0 %v281
    %v544 = vpop.f32.mrb[0].mxu0
    %v545 = vadd.f32 0.0, %v544
    %v546 = vpop.f32.mrb[0].mxu0
    %547 = vmatprep.mubr.f32.mxu0 0.0
    %548 = vmatmul.mubr.f32.gmra.mrb[0].mxu0 %v284
    %v549 = vpop.f32.mrb[0].mxu0
    %v550 = vadd.f32 0.0, %v549
    %v551 = vpop.f32.mrb[0].mxu0
    %552 = vdwg.mxu0
    %553 = vmatprep.subr.mxu0 0.0
    %554 = vmatpush1.msra.mxu0 %v66
    %555 = vmatprep.subr.mxu0 0.0
    %556 = vmatpush1.msra.mxu0 %v67
    %557 = vmatprep.subr.mxu0 0.0
    %558 = vmatpush1.msra.mxu0 %v68
    %559 = vmatprep.subr.mxu0 0.0
    %560 = vmatpush1.msra.mxu0 %v69
    %561 = vmatprep.subr.mxu0 0.0
    %562 = vmatpush1.msra.mxu0 0.0
    %563 = vmatprep.subr.mxu0 0.0
    %564 = vmatpush1.msra.mxu0 0.0
    %565 = vmatprep.subr.mxu0 0.0
    %566 = vmatpush1.msra.mxu0 0.0
    %567 = vmatprep.subr.mxu0 0.0
    %568 = vmatpush1.msra.mxu0 0.0
    %569 = vmatprep.subr.mxu0 0.0
    %570 = vmatpush1.msra.mxu0 0.0
    %571 = vmatprep.subr.mxu0 0.0
    %572 = vmatpush1.msra.mxu0 0.0
    %573 = vmatprep.subr.mxu0 0.0
    %574 = vmatpush1.msra.mxu0 0.0
    %575 = vmatprep.subr.mxu0 0.0
    %576 = vmatpush1.msra.mxu0 0.0
    %577 = vmatprep.subr.mxu0 0.0
    %578 = vmatpush1.msra.mxu0 0.0
    %579 = vmatprep.subr.mxu0 0.0
    %580 = vmatpush1.msra.mxu0 0.0
    %581 = vmatprep.subr.mxu0 0.0
    %582 = vmatpush1.msra.mxu0 0.0
    %583 = vmatprep.subr.mxu0 0.0
    %584 = vmatpush1.msra.mxu0 0.0
    %585 = vmatprep.subr.mxu0 0.0
    %586 = vmatpush1.msra.mxu0 0.0
    %587 = vmatprep.subr.mxu0 0.0
    %588 = vmatpush1.msra.mxu0 0.0
    %589 = vmatprep.subr.mxu0 0.0
    %590 = vmatpush1.msra.mxu0 0.0
    %591 = vmatprep.subr.mxu0 0.0
    %592 = vmatpush1.msra.mxu0 0.0
    %593 = vmatprep.subr.mxu0 0.0
    %594 = vmatpush1.msra.mxu0 0.0
    %595 = vmatprep.subr.mxu0 0.0
    %596 = vmatpush1.msra.mxu0 0.0
    %597 = vmatprep.subr.mxu0 0.0
    %598 = vmatpush1.msra.mxu0 0.0
    %599 = vmatprep.subr.mxu0 0.0
    %600 = vmatpush1.msra.mxu0 0.0
    %601 = vmatprep.subr.mxu0 0.0
    %602 = vmatpush1.msra.mxu0 0.0
    %603 = vmatprep.subr.mxu0 0.0
    %604 = vmatpush1.msra.mxu0 0.0
    %605 = vmatprep.subr.mxu0 0.0
    %606 = vmatpush1.msra.mxu0 0.0
    %607 = vmatprep.subr.mxu0 0.0
    %608 = vmatpush1.msra.mxu0 0.0
    %609 = vmatprep.subr.mxu0 0.0
    %610 = vmatpush1.msra.mxu0 0.0
    %611 = vmatprep.subr.mxu0 0.0
    %612 = vmatpush1.msra.mxu0 0.0
    %613 = vmatprep.subr.mxu0 0.0
    %614 = vmatpush1.msra.mxu0 0.0
    %615 = vmatprep.subr.mxu0 0.0
    %616 = vmatpush1.msra.mxu0 0.0
    %617 = vmatprep.mubr.f32.mxu0 0.0
    %618 = vmatmul.mubr.f32.gmra.mrb[0].mxu0 %v372
    %v619 = vpop.f32.mrb[0].mxu0
    %v620 = vadd.f32 0.0, %v619
    %v621 = vpop.f32.mrb[0].mxu0
    %622 = vmatprep.mubr.f32.mxu0 0.0
    %623 = vmatmul.mubr.f32.gmra.mrb[0].mxu0 %v375
    %v624 = vpop.f32.mrb[0].mxu0
    %v625 = vadd.f32 0.0, %v624
    %v626 = vpop.f32.mrb[0].mxu0
    %627 = vmatprep.mubr.f32.mxu0 0.0
    %628 = vmatmul.mubr.f32.gmra.mrb[0].mxu0 %v378
    %v629 = vpop.f32.mrb[0].mxu0
    %v630 = vadd.f32 0.0, %v629
    %v631 = vpop.f32.mrb[0].mxu0
    %632 = vmatprep.mubr.f32.mxu0 0.0
    %633 = vmatmul.mubr.f32.gmra.mrb[0].mxu0 %v381
    %v634 = vpop.f32.mrb[0].mxu0
    %v635 = vadd.f32 0.0, %v634
    %v636 = vpop.f32.mrb[0].mxu0
    %637 = vdwg.mxu0
    %v638 = vsub.f32 %v159, %v353
    %v639 = vsub.f32 %v164, %v358
    %v640 = vsub.f32 %v169, %v363
    %v641 = vsub.f32 %v174, %v368
    %v642 = vsub.f32 %v256, %v450
    %v643 = vsub.f32 %v261, %v455
    %v644 = vsub.f32 %v266, %v460
    %v645 = vsub.f32 %v271, %v465
    %646 = vmatprep.subr.mxu0 0.0
    %647 = vmatpush1.msra.mxu0 %v71
    %648 = vmatprep.subr.mxu0 0.0
    %649 = vmatpush1.msra.mxu0 %v72
    %650 = vmatprep.subr.mxu0 0.0
    %651 = vmatpush1.msra.mxu0 %v73
    %652 = vmatprep.subr.mxu0 0.0
    %653 = vmatpush1.msra.mxu0 %v74
    %654 = vmatprep.subr.mxu0 0.0
    %655 = vmatpush1.msra.mxu0 0.0
    %656 = vmatprep.subr.mxu0 0.0
    %657 = vmatpush1.msra.mxu0 0.0
    %658 = vmatprep.subr.mxu0 0.0
    %659 = vmatpush1.msra.mxu0 0.0
    %660 = vmatprep.subr.mxu0 0.0
    %661 = vmatpush1.msra.mxu0 0.0
    %662 = vmatprep.subr.mxu0 0.0
    %663 = vmatpush1.msra.mxu0 0.0
    %664 = vmatprep.subr.mxu0 0.0
    %665 = vmatpush1.msra.mxu0 0.0
    %666 = vmatprep.subr.mxu0 0.0
    %667 = vmatpush1.msra.mxu0 0.0
    %668 = vmatprep.subr.mxu0 0.0
    %669 = vmatpush1.msra.mxu0 0.0
    %670 = vmatprep.subr.mxu0 0.0
    %671 = vmatpush1.msra.mxu0 0.0
    %672 = vmatprep.subr.mxu0 0.0
    %673 = vmatpush1.msra.mxu0 0.0
    %674 = vmatprep.subr.mxu0 0.0
    %675 = vmatpush1.msra.mxu0 0.0
    %676 = vmatprep.subr.mxu0 0.0
    %677 = vmatpush1.msra.mxu0 0.0
    %678 = vmatprep.subr.mxu0 0.0
    %679 = vmatpush1.msra.mxu0 0.0
    %680 = vmatprep.subr.mxu0 0.0
    %681 = vmatpush1.msra.mxu0 0.0
    %682 = vmatprep.subr.mxu0 0.0
    %683 = vmatpush1.msra.mxu0 0.0
    %684 = vmatprep.subr.mxu0 0.0
    %685 = vmatpush1.msra.mxu0 0.0
    %686 = vmatprep.subr.mxu0 0.0
    %687 = vmatpush1.msra.mxu0 0.0
    %688 = vmatprep.subr.mxu0 0.0
    %689 = vmatpush1.msra.mxu0 0.0
    %690 = vmatprep.subr.mxu0 0.0
    %691 = vmatpush1.msra.mxu0 0.0
    %692 = vmatprep.subr.mxu0 0.0
    %693 = vmatpush1.msra.mxu0 0.0
    %694 = vmatprep.subr.mxu0 0.0
    %695 = vmatpush1.msra.mxu0 0.0
    %696 = vmatprep.subr.mxu0 0.0
    %697 = vmatpush1.msra.mxu0 0.0
    %698 = vmatprep.subr.mxu0 0.0
    %699 = vmatpush1.msra.mxu0 0.0
    %700 = vmatprep.subr.mxu0 0.0
    %701 = vmatpush1.msra.mxu0 0.0
    %702 = vmatprep.subr.mxu0 0.0
    %703 = vmatpush1.msra.mxu0 0.0
    %704 = vmatprep.subr.mxu0 0.0
    %705 = vmatpush1.msra.mxu0 0.0
    %706 = vmatprep.subr.mxu0 0.0
    %707 = vmatpush1.msra.mxu0 0.0
    %708 = vmatprep.subr.mxu0 0.0
    %709 = vmatpush1.msra.mxu0 0.0
    %710 = vmatprep.mubr.f32.mxu0 0.0
    %711 = vmatmul.mubr.f32.gmra.mrb[0].mxu0 %v81
    %v712 = vpop.f32.mrb[0].mxu0
    %v713 = vadd.f32 %v535, %v712
    %v714 = vpop.f32.mrb[0].mxu0
    %715 = vmatprep.mubr.f32.mxu0 0.0
    %716 = vmatmul.mubr.f32.gmra.mrb[0].mxu0 %v84
    %v717 = vpop.f32.mrb[0].mxu0
    %v718 = vadd.f32 %v540, %v717
    %v719 = vpop.f32.mrb[0].mxu0
    %720 = vmatprep.mubr.f32.mxu0 0.0
    %721 = vmatmul.mubr.f32.gmra.mrb[0].mxu0 %v87
    %v722 = vpop.f32.mrb[0].mxu0
    %v723 = vadd.f32 %v545, %v722
    %v724 = vpop.f32.mrb[0].mxu0
    %725 = vmatprep.mubr.f32.mxu0 0.0
    %726 = vmatmul.mubr.f32.gmra.mrb[0].mxu0 %v90
    %v727 = vpop.f32.mrb[0].mxu0
    %v728 = vadd.f32 %v550, %v727
    %v729 = vpop.f32.mrb[0].mxu0
    %730 = vdwg.mxu0
    %731 = vmatprep.subr.mxu0 0.0
    %732 = vmatpush1.msra.mxu0 %v75
    %733 = vmatprep.subr.mxu0 0.0
    %734 = vmatpush1.msra.mxu0 %v76
    %735 = vmatprep.subr.mxu0 0.0
    %736 = vmatpush1.msra.mxu0 %v77
    %737 = vmatprep.subr.mxu0 0.0
    %738 = vmatpush1.msra.mxu0 %v78
    %739 = vmatprep.subr.mxu0 0.0
    %740 = vmatpush1.msra.mxu0 0.0
    %741 = vmatprep.subr.mxu0 0.0
    %742 = vmatpush1.msra.mxu0 0.0
    %743 = vmatprep.subr.mxu0 0.0
    %744 = vmatpush1.msra.mxu0 0.0
    %745 = vmatprep.subr.mxu0 0.0
    %746 = vmatpush1.msra.mxu0 0.0
    %747 = vmatprep.subr.mxu0 0.0
    %748 = vmatpush1.msra.mxu0 0.0
    %749 = vmatprep.subr.mxu0 0.0
    %750 = vmatpush1.msra.mxu0 0.0
    %751 = vmatprep.subr.mxu0 0.0
    %752 = vmatpush1.msra.mxu0 0.0
    %753 = vmatprep.subr.mxu0 0.0
    %754 = vmatpush1.msra.mxu0 0.0
    %755 = vmatprep.subr.mxu0 0.0
    %756 = vmatpush1.msra.mxu0 0.0
    %757 = vmatprep.subr.mxu0 0.0
    %758 = vmatpush1.msra.mxu0 0.0
    %759 = vmatprep.subr.mxu0 0.0
    %760 = vmatpush1.msra.mxu0 0.0
    %761 = vmatprep.subr.mxu0 0.0
    %762 = vmatpush1.msra.mxu0 0.0
    %763 = vmatprep.subr.mxu0 0.0
    %764 = vmatpush1.msra.mxu0 0.0
    %765 = vmatprep.subr.mxu0 0.0
    %766 = vmatpush1.msra.mxu0 0.0
    %767 = vmatprep.subr.mxu0 0.0
    %768 = vmatpush1.msra.mxu0 0.0
    %769 = vmatprep.subr.mxu0 0.0
    %770 = vmatpush1.msra.mxu0 0.0
    %771 = vmatprep.subr.mxu0 0.0
    %772 = vmatpush1.msra.mxu0 0.0
    %773 = vmatprep.subr.mxu0 0.0
    %774 = vmatpush1.msra.mxu0 0.0
    %775 = vmatprep.subr.mxu0 0.0
    %776 = vmatpush1.msra.mxu0 0.0
    %777 = vmatprep.subr.mxu0 0.0
    %778 = vmatpush1.msra.mxu0 0.0
    %779 = vmatprep.subr.mxu0 0.0
    %780 = vmatpush1.msra.mxu0 0.0
    %781 = vmatprep.subr.mxu0 0.0
    %782 = vmatpush1.msra.mxu0 0.0
    %783 = vmatprep.subr.mxu0 0.0
    %784 = vmatpush1.msra.mxu0 0.0
    %785 = vmatprep.subr.mxu0 0.0
    %786 = vmatpush1.msra.mxu0 0.0
    %787 = vmatprep.subr.mxu0 0.0
    %788 = vmatpush1.msra.mxu0 0.0
    %789 = vmatprep.subr.mxu0 0.0
    %790 = vmatpush1.msra.mxu0 0.0
    %791 = vmatprep.subr.mxu0 0.0
    %792 = vmatpush1.msra.mxu0 0.0
    %793 = vmatprep.subr.mxu0 0.0
    %794 = vmatpush1.msra.mxu0 0.0
    %795 = vmatprep.mubr.f32.mxu0 0.0
    %796 = vmatmul.mubr.f32.gmra.mrb[0].mxu0 %v178
    %v797 = vpop.f32.mrb[0].mxu0
    %v798 = vadd.f32 %v620, %v797
    %v799 = vpop.f32.mrb[0].mxu0
    %800 = vmatprep.mubr.f32.mxu0 0.0
    %801 = vmatmul.mubr.f32.gmra.mrb[0].mxu0 %v181
    %v802 = vpop.f32.mrb[0].mxu0
    %v803 = vadd.f32 %v625, %v802
    %v804 = vpop.f32.mrb[0].mxu0
    %805 = vmatprep.mubr.f32.mxu0 0.0
    %806 = vmatmul.mubr.f32.gmra.mrb[0].mxu0 %v184
    %v807 = vpop.f32.mrb[0].mxu0
    %v808 = vadd.f32 %v630, %v807
    %v809 = vpop.f32.mrb[0].mxu0
    %810 = vmatprep.mubr.f32.mxu0 0.0
    %811 = vmatmul.mubr.f32.gmra.mrb[0].mxu0 %v187
    %v812 = vpop.f32.mrb[0].mxu0
    %v813 = vadd.f32 %v635, %v812
    %v814 = vpop.f32.mrb[0].mxu0
    %815 = vdwg.mxu0
    %v816 = vld [vmem:[#allocation2] sm:$0xff]
    %v817 = vld [vmem:[#allocation2 + $0x8] sm:$0xff]
    %v818 = vld [vmem:[#allocation2 + $0x10] sm:$0xff]
    %v819 = vld [vmem:[#allocation2 + $0x18] sm:$0xff]
    %v820 = vld [vmem:[#allocation2 + $0x40] sm:$0xff]
    %v821 = vld [vmem:[#allocation2 + $0x48] sm:$0xff]
    %v822 = vld [vmem:[#allocation2 + $0x50] sm:$0xff]
    %v823 = vld [vmem:[#allocation2 + $0x58] sm:$0xff]
    %s824 = scalar_lea.vmem [#allocation2], 32
    %v825 = vld [vmem:[%s824] sm:$0xff]
    %v826 = vld [vmem:[%s824 + $0x8] sm:$0xff]
    %v827 = vld [vmem:[%s824 + $0x10] sm:$0xff]
    %v828 = vld [vmem:[%s824 + $0x18] sm:$0xff]
    %v829 = vld [vmem:[%s824 + $0x40] sm:$0xff]
    %v830 = vld [vmem:[%s824 + $0x48] sm:$0xff]
    %v831 = vld [vmem:[%s824 + $0x50] sm:$0xff]
    %v832 = vld [vmem:[%s824 + $0x58] sm:$0xff]
    %v834 = vsel %vm79, %v816, 0
    %v837 = vsel %vm79, %v817, 0
    %v840 = vsel %vm79, %v818, 0
    %v843 = vsel %vm79, %v819, 0
    %845 = vmatprep.subr.mxu0 0.0
    %846 = vmatpush1.msra.mxu0 %v638
    %847 = vmatprep.subr.mxu0 0.0
    %848 = vmatpush1.msra.mxu0 %v639
    %849 = vmatprep.subr.mxu0 0.0
    %850 = vmatpush1.msra.mxu0 %v640
    %851 = vmatprep.subr.mxu0 0.0
    %852 = vmatpush1.msra.mxu0 %v641
    %853 = vmatprep.subr.mxu0 0.0
    %854 = vmatpush1.msra.mxu0 0.0
    %855 = vmatprep.subr.mxu0 0.0
    %856 = vmatpush1.msra.mxu0 0.0
    %857 = vmatprep.subr.mxu0 0.0
    %858 = vmatpush1.msra.mxu0 0.0
    %859 = vmatprep.subr.mxu0 0.0
    %860 = vmatpush1.msra.mxu0 0.0
    %861 = vmatprep.subr.mxu0 0.0
    %862 = vmatpush1.msra.mxu0 0.0
    %863 = vmatprep.subr.mxu0 0.0
    %864 = vmatpush1.msra.mxu0 0.0
    %865 = vmatprep.subr.mxu0 0.0
    %866 = vmatpush1.msra.mxu0 0.0
    %867 = vmatprep.subr.mxu0 0.0
    %868 = vmatpush1.msra.mxu0 0.0
    %869 = vmatprep.subr.mxu0 0.0
    %870 = vmatpush1.msra.mxu0 0.0
    %871 = vmatprep.subr.mxu0 0.0
    %872 = vmatpush1.msra.mxu0 0.0
    %873 = vmatprep.subr.mxu0 0.0
    %874 = vmatpush1.msra.mxu0 0.0
    %875 = vmatprep.subr.mxu0 0.0
    %876 = vmatpush1.msra.mxu0 0.0
    %877 = vmatprep.subr.mxu0 0.0
    %878 = vmatpush1.msra.mxu0 0.0
    %879 = vmatprep.subr.mxu0 0.0
    %880 = vmatpush1.msra.mxu0 0.0
    %881 = vmatprep.subr.mxu0 0.0
    %882 = vmatpush1.msra.mxu0 0.0
    %883 = vmatprep.subr.mxu0 0.0
    %884 = vmatpush1.msra.mxu0 0.0
    %885 = vmatprep.subr.mxu0 0.0
    %886 = vmatpush1.msra.mxu0 0.0
    %887 = vmatprep.subr.mxu0 0.0
    %888 = vmatpush1.msra.mxu0 0.0
    %889 = vmatprep.subr.mxu0 0.0
    %890 = vmatpush1.msra.mxu0 0.0
    %891 = vmatprep.subr.mxu0 0.0
    %892 = vmatpush1.msra.mxu0 0.0
    %893 = vmatprep.subr.mxu0 0.0
    %894 = vmatpush1.msra.mxu0 0.0
    %895 = vmatprep.subr.mxu0 0.0
    %896 = vmatpush1.msra.mxu0 0.0
    %897 = vmatprep.subr.mxu0 0.0
    %898 = vmatpush1.msra.mxu0 0.0
    %899 = vmatprep.subr.mxu0 0.0
    %900 = vmatpush1.msra.mxu0 0.0
    %901 = vmatprep.subr.mxu0 0.0
    %902 = vmatpush1.msra.mxu0 0.0
    %903 = vmatprep.subr.mxu0 0.0
    %904 = vmatpush1.msra.mxu0 0.0
    %905 = vmatprep.subr.mxu0 0.0
    %906 = vmatpush1.msra.mxu0 0.0
    %907 = vmatprep.subr.mxu0 0.0
    %908 = vmatpush1.msra.mxu0 0.0
    %909 = vmatprep.mubr.f32.mxu0 0.0
    %910 = vmatmul.mubr.f32.gmra.mrb[0].mxu0 %v834
    %v911 = vpop.f32.mrb[0].mxu0
    %v912 = vadd.f32 0.0, %v911
    %v913 = vpop.f32.mrb[0].mxu0
    %914 = vmatprep.mubr.f32.mxu0 0.0
    %915 = vmatmul.mubr.f32.gmra.mrb[0].mxu0 %v837
    %v916 = vpop.f32.mrb[0].mxu0
    %v917 = vadd.f32 0.0, %v916
    %v918 = vpop.f32.mrb[0].mxu0
    %919 = vmatprep.mubr.f32.mxu0 0.0
    %920 = vmatmul.mubr.f32.gmra.mrb[0].mxu0 %v840
    %v921 = vpop.f32.mrb[0].mxu0
    %v922 = vadd.f32 0.0, %v921
    %v923 = vpop.f32.mrb[0].mxu0
    %924 = vmatprep.mubr.f32.mxu0 0.0
    %925 = vmatmul.mubr.f32.gmra.mrb[0].mxu0 %v843
    %v926 = vpop.f32.mrb[0].mxu0
    %v927 = vadd.f32 0.0, %v926
    %v928 = vpop.f32.mrb[0].mxu0
    %929 = vdwg.mxu0
    %v931 = vsel %vm79, %v820, 0
    %v934 = vsel %vm79, %v821, 0
    %v937 = vsel %vm79, %v822, 0
    %v940 = vsel %vm79, %v823, 0
    %942 = vmatprep.subr.mxu0 0.0
    %943 = vmatpush1.msra.mxu0 %v642
    %944 = vmatprep.subr.mxu0 0.0
    %945 = vmatpush1.msra.mxu0 %v643
    %946 = vmatprep.subr.mxu0 0.0
    %947 = vmatpush1.msra.mxu0 %v644
    %948 = vmatprep.subr.mxu0 0.0
    %949 = vmatpush1.msra.mxu0 %v645
    %950 = vmatprep.subr.mxu0 0.0
    %951 = vmatpush1.msra.mxu0 0.0
    %952 = vmatprep.subr.mxu0 0.0
    %953 = vmatpush1.msra.mxu0 0.0
    %954 = vmatprep.subr.mxu0 0.0
    %955 = vmatpush1.msra.mxu0 0.0
    %956 = vmatprep.subr.mxu0 0.0
    %957 = vmatpush1.msra.mxu0 0.0
    %958 = vmatprep.subr.mxu0 0.0
    %959 = vmatpush1.msra.mxu0 0.0
    %960 = vmatprep.subr.mxu0 0.0
    %961 = vmatpush1.msra.mxu0 0.0
    %962 = vmatprep.subr.mxu0 0.0
    %963 = vmatpush1.msra.mxu0 0.0
    %964 = vmatprep.subr.mxu0 0.0
    %965 = vmatpush1.msra.mxu0 0.0
    %966 = vmatprep.subr.mxu0 0.0
    %967 = vmatpush1.msra.mxu0 0.0
    %968 = vmatprep.subr.mxu0 0.0
    %969 = vmatpush1.msra.mxu0 0.0
    %970 = vmatprep.subr.mxu0 0.0
    %971 = vmatpush1.msra.mxu0 0.0
    %972 = vmatprep.subr.mxu0 0.0
    %973 = vmatpush1.msra.mxu0 0.0
    %974 = vmatprep.subr.mxu0 0.0
    %975 = vmatpush1.msra.mxu0 0.0
    %976 = vmatprep.subr.mxu0 0.0
    %977 = vmatpush1.msra.mxu0 0.0
    %978 = vmatprep.subr.mxu0 0.0
    %979 = vmatpush1.msra.mxu0 0.0
    %980 = vmatprep.subr.mxu0 0.0
    %981 = vmatpush1.msra.mxu0 0.0
    %982 = vmatprep.subr.mxu0 0.0
    %983 = vmatpush1.msra.mxu0 0.0
    %984 = vmatprep.subr.mxu0 0.0
    %985 = vmatpush1.msra.mxu0 0.0
    %986 = vmatprep.subr.mxu0 0.0
    %987 = vmatpush1.msra.mxu0 0.0
    %988 = vmatprep.subr.mxu0 0.0
    %989 = vmatpush1.msra.mxu0 0.0
    %990 = vmatprep.subr.mxu0 0.0
    %991 = vmatpush1.msra.mxu0 0.0
    %992 = vmatprep.subr.mxu0 0.0
    %993 = vmatpush1.msra.mxu0 0.0
    %994 = vmatprep.subr.mxu0 0.0
    %995 = vmatpush1.msra.mxu0 0.0
    %996 = vmatprep.subr.mxu0 0.0
    %997 = vmatpush1.msra.mxu0 0.0
    %998 = vmatprep.subr.mxu0 0.0
    %999 = vmatpush1.msra.mxu0 0.0
    %1000 = vmatprep.subr.mxu0 0.0
    %1001 = vmatpush1.msra.mxu0 0.0
    %1002 = vmatprep.subr.mxu0 0.0
    %1003 = vmatpush1.msra.mxu0 0.0
    %1004 = vmatprep.subr.mxu0 0.0
    %1005 = vmatpush1.msra.mxu0 0.0
    %1006 = vmatprep.mubr.f32.mxu0 0.0
    %1007 = vmatmul.mubr.f32.gmra.mrb[0].mxu0 %v931
    %v1008 = vpop.f32.mrb[0].mxu0
    %v1009 = vadd.f32 0.0, %v1008
    %v1010 = vpop.f32.mrb[0].mxu0
    %1011 = vmatprep.mubr.f32.mxu0 0.0
    %1012 = vmatmul.mubr.f32.gmra.mrb[0].mxu0 %v934
    %v1013 = vpop.f32.mrb[0].mxu0
    %v1014 = vadd.f32 0.0, %v1013
    %v1015 = vpop.f32.mrb[0].mxu0
    %1016 = vmatprep.mubr.f32.mxu0 0.0
    %1017 = vmatmul.mubr.f32.gmra.mrb[0].mxu0 %v937
    %v1018 = vpop.f32.mrb[0].mxu0
    %v1019 = vadd.f32 0.0, %v1018
    %v1020 = vpop.f32.mrb[0].mxu0
    %1021 = vmatprep.mubr.f32.mxu0 0.0
    %1022 = vmatmul.mubr.f32.gmra.mrb[0].mxu0 %v940
    %v1023 = vpop.f32.mrb[0].mxu0
    %v1024 = vadd.f32 0.0, %v1023
    %v1025 = vpop.f32.mrb[0].mxu0
    %1026 = vdwg.mxu0
    %v1028 = vsel %vm79, %v825, 0
    %v1031 = vsel %vm79, %v826, 0
    %v1034 = vsel %vm79, %v827, 0
    %v1037 = vsel %vm79, %v828, 0
    %1039 = vmatprep.subr.mxu0 0.0
    %1040 = vmatpush1.msra.mxu0 %v713
    %1041 = vmatprep.subr.mxu0 0.0
    %1042 = vmatpush1.msra.mxu0 %v718
    %1043 = vmatprep.subr.mxu0 0.0
    %1044 = vmatpush1.msra.mxu0 %v723
    %1045 = vmatprep.subr.mxu0 0.0
    %1046 = vmatpush1.msra.mxu0 %v728
    %1047 = vmatprep.subr.mxu0 0.0
    %1048 = vmatpush1.msra.mxu0 0.0
    %1049 = vmatprep.subr.mxu0 0.0
    %1050 = vmatpush1.msra.mxu0 0.0
    %1051 = vmatprep.subr.mxu0 0.0
    %1052 = vmatpush1.msra.mxu0 0.0
    %1053 = vmatprep.subr.mxu0 0.0
    %1054 = vmatpush1.msra.mxu0 0.0
    %1055 = vmatprep.subr.mxu0 0.0
    %1056 = vmatpush1.msra.mxu0 0.0
    %1057 = vmatprep.subr.mxu0 0.0
    %1058 = vmatpush1.msra.mxu0 0.0
    %1059 = vmatprep.subr.mxu0 0.0
    %1060 = vmatpush1.msra.mxu0 0.0
    %1061 = vmatprep.subr.mxu0 0.0
    %1062 = vmatpush1.msra.mxu0 0.0
    %1063 = vmatprep.subr.mxu0 0.0
    %1064 = vmatpush1.msra.mxu0 0.0
    %1065 = vmatprep.subr.mxu0 0.0
    %1066 = vmatpush1.msra.mxu0 0.0
    %1067 = vmatprep.subr.mxu0 0.0
    %1068 = vmatpush1.msra.mxu0 0.0
    %1069 = vmatprep.subr.mxu0 0.0
    %1070 = vmatpush1.msra.mxu0 0.0
    %1071 = vmatprep.subr.mxu0 0.0
    %1072 = vmatpush1.msra.mxu0 0.0
    %1073 = vmatprep.subr.mxu0 0.0
    %1074 = vmatpush1.msra.mxu0 0.0
    %1075 = vmatprep.subr.mxu0 0.0
    %1076 = vmatpush1.msra.mxu0 0.0
    %1077 = vmatprep.subr.mxu0 0.0
    %1078 = vmatpush1.msra.mxu0 0.0
    %1079 = vmatprep.subr.mxu0 0.0
    %1080 = vmatpush1.msra.mxu0 0.0
    %1081 = vmatprep.subr.mxu0 0.0
    %1082 = vmatpush1.msra.mxu0 0.0
    %1083 = vmatprep.subr.mxu0 0.0
    %1084 = vmatpush1.msra.mxu0 0.0
    %1085 = vmatprep.subr.mxu0 0.0
    %1086 = vmatpush1.msra.mxu0 0.0
    %1087 = vmatprep.subr.mxu0 0.0
    %1088 = vmatpush1.msra.mxu0 0.0
    %1089 = vmatprep.subr.mxu0 0.0
    %1090 = vmatpush1.msra.mxu0 0.0
    %1091 = vmatprep.subr.mxu0 0.0
    %1092 = vmatpush1.msra.mxu0 0.0
    %1093 = vmatprep.subr.mxu0 0.0
    %1094 = vmatpush1.msra.mxu0 0.0
    %1095 = vmatprep.subr.mxu0 0.0
    %1096 = vmatpush1.msra.mxu0 0.0
    %1097 = vmatprep.subr.mxu0 0.0
    %1098 = vmatpush1.msra.mxu0 0.0
    %1099 = vmatprep.subr.mxu0 0.0
    %1100 = vmatpush1.msra.mxu0 0.0
    %1101 = vmatprep.subr.mxu0 0.0
    %1102 = vmatpush1.msra.mxu0 0.0
    %1103 = vmatprep.mubr.f32.mxu0 0.0
    %1104 = vmatmul.mubr.f32.gmra.mrb[0].mxu0 %v1028
    %v1105 = vpop.f32.mrb[0].mxu0
    %v1106 = vadd.f32 0.0, %v1105
    %v1107 = vpop.f32.mrb[0].mxu0
    %1108 = vmatprep.mubr.f32.mxu0 0.0
    %1109 = vmatmul.mubr.f32.gmra.mrb[0].mxu0 %v1031
    %v1110 = vpop.f32.mrb[0].mxu0
    %v1111 = vadd.f32 0.0, %v1110
    %v1112 = vpop.f32.mrb[0].mxu0
    %1113 = vmatprep.mubr.f32.mxu0 0.0
    %1114 = vmatmul.mubr.f32.gmra.mrb[0].mxu0 %v1034
    %v1115 = vpop.f32.mrb[0].mxu0
    %v1116 = vadd.f32 0.0, %v1115
    %v1117 = vpop.f32.mrb[0].mxu0
    %1118 = vmatprep.mubr.f32.mxu0 0.0
    %1119 = vmatmul.mubr.f32.gmra.mrb[0].mxu0 %v1037
    %v1120 = vpop.f32.mrb[0].mxu0
    %v1121 = vadd.f32 0.0, %v1120
    %v1122 = vpop.f32.mrb[0].mxu0
    %1123 = vdwg.mxu0
    %v1125 = vsel %vm79, %v829, 0
    %v1128 = vsel %vm79, %v830, 0
    %v1131 = vsel %vm79, %v831, 0
    %v1134 = vsel %vm79, %v832, 0
    %1136 = vmatprep.subr.mxu0 0.0
    %1137 = vmatpush1.msra.mxu0 %v798
    %1138 = vmatprep.subr.mxu0 0.0
    %1139 = vmatpush1.msra.mxu0 %v803
    %1140 = vmatprep.subr.mxu0 0.0
    %1141 = vmatpush1.msra.mxu0 %v808
    %1142 = vmatprep.subr.mxu0 0.0
    %1143 = vmatpush1.msra.mxu0 %v813
    %1144 = vmatprep.subr.mxu0 0.0
    %1145 = vmatpush1.msra.mxu0 0.0
    %1146 = vmatprep.subr.mxu0 0.0
    %1147 = vmatpush1.msra.mxu0 0.0
    %1148 = vmatprep.subr.mxu0 0.0
    %1149 = vmatpush1.msra.mxu0 0.0
    %1150 = vmatprep.subr.mxu0 0.0
    %1151 = vmatpush1.msra.mxu0 0.0
    %1152 = vmatprep.subr.mxu0 0.0
    %1153 = vmatpush1.msra.mxu0 0.0
    %1154 = vmatprep.subr.mxu0 0.0
    %1155 = vmatpush1.msra.mxu0 0.0
    %1156 = vmatprep.subr.mxu0 0.0
    %1157 = vmatpush1.msra.mxu0 0.0
    %1158 = vmatprep.subr.mxu0 0.0
    %1159 = vmatpush1.msra.mxu0 0.0
    %1160 = vmatprep.subr.mxu0 0.0
    %1161 = vmatpush1.msra.mxu0 0.0
    %1162 = vmatprep.subr.mxu0 0.0
    %1163 = vmatpush1.msra.mxu0 0.0
    %1164 = vmatprep.subr.mxu0 0.0
    %1165 = vmatpush1.msra.mxu0 0.0
    %1166 = vmatprep.subr.mxu0 0.0
    %1167 = vmatpush1.msra.mxu0 0.0
    %1168 = vmatprep.subr.mxu0 0.0
    %1169 = vmatpush1.msra.mxu0 0.0
    %1170 = vmatprep.subr.mxu0 0.0
    %1171 = vmatpush1.msra.mxu0 0.0
    %1172 = vmatprep.subr.mxu0 0.0
    %1173 = vmatpush1.msra.mxu0 0.0
    %1174 = vmatprep.subr.mxu0 0.0
    %1175 = vmatpush1.msra.mxu0 0.0
    %1176 = vmatprep.subr.mxu0 0.0
    %1177 = vmatpush1.msra.mxu0 0.0
    %1178 = vmatprep.subr.mxu0 0.0
    %1179 = vmatpush1.msra.mxu0 0.0
    %1180 = vmatprep.subr.mxu0 0.0
    %1181 = vmatpush1.msra.mxu0 0.0
    %1182 = vmatprep.subr.mxu0 0.0
    %1183 = vmatpush1.msra.mxu0 0.0
    %1184 = vmatprep.subr.mxu0 0.0
    %1185 = vmatpush1.msra.mxu0 0.0
    %1186 = vmatprep.subr.mxu0 0.0
    %1187 = vmatpush1.msra.mxu0 0.0
    %1188 = vmatprep.subr.mxu0 0.0
    %1189 = vmatpush1.msra.mxu0 0.0
    %1190 = vmatprep.subr.mxu0 0.0
    %1191 = vmatpush1.msra.mxu0 0.0
    %1192 = vmatprep.subr.mxu0 0.0
    %1193 = vmatpush1.msra.mxu0 0.0
    %1194 = vmatprep.subr.mxu0 0.0
    %1195 = vmatpush1.msra.mxu0 0.0
    %1196 = vmatprep.subr.mxu0 0.0
    %1197 = vmatpush1.msra.mxu0 0.0
    %1198 = vmatprep.subr.mxu0 0.0
    %1199 = vmatpush1.msra.mxu0 0.0
    %1200 = vmatprep.mubr.f32.mxu0 0.0
    %1201 = vmatmul.mubr.f32.gmra.mrb[0].mxu0 %v1125
    %v1202 = vpop.f32.mrb[0].mxu0
    %v1203 = vadd.f32 0.0, %v1202
    %v1204 = vpop.f32.mrb[0].mxu0
    %1205 = vmatprep.mubr.f32.mxu0 0.0
    %1206 = vmatmul.mubr.f32.gmra.mrb[0].mxu0 %v1128
    %v1207 = vpop.f32.mrb[0].mxu0
    %v1208 = vadd.f32 0.0, %v1207
    %v1209 = vpop.f32.mrb[0].mxu0
    %1210 = vmatprep.mubr.f32.mxu0 0.0
    %1211 = vmatmul.mubr.f32.gmra.mrb[0].mxu0 %v1131
    %v1212 = vpop.f32.mrb[0].mxu0
    %v1213 = vadd.f32 0.0, %v1212
    %v1214 = vpop.f32.mrb[0].mxu0
    %1215 = vmatprep.mubr.f32.mxu0 0.0
    %1216 = vmatmul.mubr.f32.gmra.mrb[0].mxu0 %v1134
    %v1217 = vpop.f32.mrb[0].mxu0
    %v1218 = vadd.f32 0.0, %v1217
    %v1219 = vpop.f32.mrb[0].mxu0
    %1220 = vdwg.mxu0
    %1221 = vmatprep.subr.mxu0 0.0
    %1222 = vmatpush1.msra.mxu0 %v638
    %1223 = vmatprep.subr.mxu0 0.0
    %1224 = vmatpush1.msra.mxu0 %v639
    %1225 = vmatprep.subr.mxu0 0.0
    %1226 = vmatpush1.msra.mxu0 %v640
    %1227 = vmatprep.subr.mxu0 0.0
    %1228 = vmatpush1.msra.mxu0 %v641
    %1229 = vmatprep.subr.mxu0 0.0
    %1230 = vmatpush1.msra.mxu0 0.0
    %1231 = vmatprep.subr.mxu0 0.0
    %1232 = vmatpush1.msra.mxu0 0.0
    %1233 = vmatprep.subr.mxu0 0.0
    %1234 = vmatpush1.msra.mxu0 0.0
    %1235 = vmatprep.subr.mxu0 0.0
    %1236 = vmatpush1.msra.mxu0 0.0
    %1237 = vmatprep.subr.mxu0 0.0
    %1238 = vmatpush1.msra.mxu0 0.0
    %1239 = vmatprep.subr.mxu0 0.0
    %1240 = vmatpush1.msra.mxu0 0.0
    %1241 = vmatprep.subr.mxu0 0.0
    %1242 = vmatpush1.msra.mxu0 0.0
    %1243 = vmatprep.subr.mxu0 0.0
    %1244 = vmatpush1.msra.mxu0 0.0
    %1245 = vmatprep.subr.mxu0 0.0
    %1246 = vmatpush1.msra.mxu0 0.0
    %1247 = vmatprep.subr.mxu0 0.0
    %1248 = vmatpush1.msra.mxu0 0.0
    %1249 = vmatprep.subr.mxu0 0.0
    %1250 = vmatpush1.msra.mxu0 0.0
    %1251 = vmatprep.subr.mxu0 0.0
    %1252 = vmatpush1.msra.mxu0 0.0
    %1253 = vmatprep.subr.mxu0 0.0
    %1254 = vmatpush1.msra.mxu0 0.0
    %1255 = vmatprep.subr.mxu0 0.0
    %1256 = vmatpush1.msra.mxu0 0.0
    %1257 = vmatprep.subr.mxu0 0.0
    %1258 = vmatpush1.msra.mxu0 0.0
    %1259 = vmatprep.subr.mxu0 0.0
    %1260 = vmatpush1.msra.mxu0 0.0
    %1261 = vmatprep.subr.mxu0 0.0
    %1262 = vmatpush1.msra.mxu0 0.0
    %1263 = vmatprep.subr.mxu0 0.0
    %1264 = vmatpush1.msra.mxu0 0.0
    %1265 = vmatprep.subr.mxu0 0.0
    %1266 = vmatpush1.msra.mxu0 0.0
    %1267 = vmatprep.subr.mxu0 0.0
    %1268 = vmatpush1.msra.mxu0 0.0
    %1269 = vmatprep.subr.mxu0 0.0
    %1270 = vmatpush1.msra.mxu0 0.0
    %1271 = vmatprep.subr.mxu0 0.0
    %1272 = vmatpush1.msra.mxu0 0.0
    %1273 = vmatprep.subr.mxu0 0.0
    %1274 = vmatpush1.msra.mxu0 0.0
    %1275 = vmatprep.subr.mxu0 0.0
    %1276 = vmatpush1.msra.mxu0 0.0
    %1277 = vmatprep.subr.mxu0 0.0
    %1278 = vmatpush1.msra.mxu0 0.0
    %1279 = vmatprep.subr.mxu0 0.0
    %1280 = vmatpush1.msra.mxu0 0.0
    %1281 = vmatprep.subr.mxu0 0.0
    %1282 = vmatpush1.msra.mxu0 0.0
    %1283 = vmatprep.subr.mxu0 0.0
    %1284 = vmatpush1.msra.mxu0 0.0
    %1285 = vmatprep.mubr.f32.mxu0 0.0
    %1286 = vmatmul.mubr.f32.gmra.mrb[0].mxu0 %v1028
    %v1287 = vpop.f32.mrb[0].mxu0
    %v1288 = vadd.f32 0.0, %v1287
    %v1289 = vpop.f32.mrb[0].mxu0
    %1290 = vmatprep.mubr.f32.mxu0 0.0
    %1291 = vmatmul.mubr.f32.gmra.mrb[0].mxu0 %v1031
    %v1292 = vpop.f32.mrb[0].mxu0
    %v1293 = vadd.f32 0.0, %v1292
    %v1294 = vpop.f32.mrb[0].mxu0
    %1295 = vmatprep.mubr.f32.mxu0 0.0
    %1296 = vmatmul.mubr.f32.gmra.mrb[0].mxu0 %v1034
    %v1297 = vpop.f32.mrb[0].mxu0
    %v1298 = vadd.f32 0.0, %v1297
    %v1299 = vpop.f32.mrb[0].mxu0
    %1300 = vmatprep.mubr.f32.mxu0 0.0
    %1301 = vmatmul.mubr.f32.gmra.mrb[0].mxu0 %v1037
    %v1302 = vpop.f32.mrb[0].mxu0
    %v1303 = vadd.f32 0.0, %v1302
    %v1304 = vpop.f32.mrb[0].mxu0
    %1305 = vdwg.mxu0
    %1306 = vmatprep.subr.mxu0 0.0
    %1307 = vmatpush1.msra.mxu0 %v642
    %1308 = vmatprep.subr.mxu0 0.0
    %1309 = vmatpush1.msra.mxu0 %v643
    %1310 = vmatprep.subr.mxu0 0.0
    %1311 = vmatpush1.msra.mxu0 %v644
    %1312 = vmatprep.subr.mxu0 0.0
    %1313 = vmatpush1.msra.mxu0 %v645
    %1314 = vmatprep.subr.mxu0 0.0
    %1315 = vmatpush1.msra.mxu0 0.0
    %1316 = vmatprep.subr.mxu0 0.0
    %1317 = vmatpush1.msra.mxu0 0.0
    %1318 = vmatprep.subr.mxu0 0.0
    %1319 = vmatpush1.msra.mxu0 0.0
    %1320 = vmatprep.subr.mxu0 0.0
    %1321 = vmatpush1.msra.mxu0 0.0
    %1322 = vmatprep.subr.mxu0 0.0
    %1323 = vmatpush1.msra.mxu0 0.0
    %1324 = vmatprep.subr.mxu0 0.0
    %1325 = vmatpush1.msra.mxu0 0.0
    %1326 = vmatprep.subr.mxu0 0.0
    %1327 = vmatpush1.msra.mxu0 0.0
    %1328 = vmatprep.subr.mxu0 0.0
    %1329 = vmatpush1.msra.mxu0 0.0
    %1330 = vmatprep.subr.mxu0 0.0
    %1331 = vmatpush1.msra.mxu0 0.0
    %1332 = vmatprep.subr.mxu0 0.0
    %1333 = vmatpush1.msra.mxu0 0.0
    %1334 = vmatprep.subr.mxu0 0.0
    %1335 = vmatpush1.msra.mxu0 0.0
    %1336 = vmatprep.subr.mxu0 0.0
    %1337 = vmatpush1.msra.mxu0 0.0
    %1338 = vmatprep.subr.mxu0 0.0
    %1339 = vmatpush1.msra.mxu0 0.0
    %1340 = vmatprep.subr.mxu0 0.0
    %1341 = vmatpush1.msra.mxu0 0.0
    %1342 = vmatprep.subr.mxu0 0.0
    %1343 = vmatpush1.msra.mxu0 0.0
    %1344 = vmatprep.subr.mxu0 0.0
    %1345 = vmatpush1.msra.mxu0 0.0
    %1346 = vmatprep.subr.mxu0 0.0
    %1347 = vmatpush1.msra.mxu0 0.0
    %1348 = vmatprep.subr.mxu0 0.0
    %1349 = vmatpush1.msra.mxu0 0.0
    %1350 = vmatprep.subr.mxu0 0.0
    %1351 = vmatpush1.msra.mxu0 0.0
    %1352 = vmatprep.subr.mxu0 0.0
    %1353 = vmatpush1.msra.mxu0 0.0
    %1354 = vmatprep.subr.mxu0 0.0
    %1355 = vmatpush1.msra.mxu0 0.0
    %1356 = vmatprep.subr.mxu0 0.0
    %1357 = vmatpush1.msra.mxu0 0.0
    %1358 = vmatprep.subr.mxu0 0.0
    %1359 = vmatpush1.msra.mxu0 0.0
    %1360 = vmatprep.subr.mxu0 0.0
    %1361 = vmatpush1.msra.mxu0 0.0
    %1362 = vmatprep.subr.mxu0 0.0
    %1363 = vmatpush1.msra.mxu0 0.0
    %1364 = vmatprep.subr.mxu0 0.0
    %1365 = vmatpush1.msra.mxu0 0.0
    %1366 = vmatprep.subr.mxu0 0.0
    %1367 = vmatpush1.msra.mxu0 0.0
    %1368 = vmatprep.subr.mxu0 0.0
    %1369 = vmatpush1.msra.mxu0 0.0
    %1370 = vmatprep.mubr.f32.mxu0 0.0
    %1371 = vmatmul.mubr.f32.gmra.mrb[0].mxu0 %v1125
    %v1372 = vpop.f32.mrb[0].mxu0
    %v1373 = vadd.f32 0.0, %v1372
    %v1374 = vpop.f32.mrb[0].mxu0
    %1375 = vmatprep.mubr.f32.mxu0 0.0
    %1376 = vmatmul.mubr.f32.gmra.mrb[0].mxu0 %v1128
    %v1377 = vpop.f32.mrb[0].mxu0
    %v1378 = vadd.f32 0.0, %v1377
    %v1379 = vpop.f32.mrb[0].mxu0
    %1380 = vmatprep.mubr.f32.mxu0 0.0
    %1381 = vmatmul.mubr.f32.gmra.mrb[0].mxu0 %v1131
    %v1382 = vpop.f32.mrb[0].mxu0
    %v1383 = vadd.f32 0.0, %v1382
    %v1384 = vpop.f32.mrb[0].mxu0
    %1385 = vmatprep.mubr.f32.mxu0 0.0
    %1386 = vmatmul.mubr.f32.gmra.mrb[0].mxu0 %v1134
    %v1387 = vpop.f32.mrb[0].mxu0
    %v1388 = vadd.f32 0.0, %v1387
    %v1389 = vpop.f32.mrb[0].mxu0
    %1390 = vdwg.mxu0
    %v1391 = vsub.f32 %v912, %v1106
    %v1392 = vsub.f32 %v917, %v1111
    %v1393 = vsub.f32 %v922, %v1116
    %v1394 = vsub.f32 %v927, %v1121
    %v1395 = vsub.f32 %v1009, %v1203
    %v1396 = vsub.f32 %v1014, %v1208
    %v1397 = vsub.f32 %v1019, %v1213
    %v1398 = vsub.f32 %v1024, %v1218
    %1399 = vmatprep.subr.mxu0 0.0
    %1400 = vmatpush1.msra.mxu0 %v713
    %1401 = vmatprep.subr.mxu0 0.0
    %1402 = vmatpush1.msra.mxu0 %v718
    %1403 = vmatprep.subr.mxu0 0.0
    %1404 = vmatpush1.msra.mxu0 %v723
    %1405 = vmatprep.subr.mxu0 0.0
    %1406 = vmatpush1.msra.mxu0 %v728
    %1407 = vmatprep.subr.mxu0 0.0
    %1408 = vmatpush1.msra.mxu0 0.0
    %1409 = vmatprep.subr.mxu0 0.0
    %1410 = vmatpush1.msra.mxu0 0.0
    %1411 = vmatprep.subr.mxu0 0.0
    %1412 = vmatpush1.msra.mxu0 0.0
    %1413 = vmatprep.subr.mxu0 0.0
    %1414 = vmatpush1.msra.mxu0 0.0
    %1415 = vmatprep.subr.mxu0 0.0
    %1416 = vmatpush1.msra.mxu0 0.0
    %1417 = vmatprep.subr.mxu0 0.0
    %1418 = vmatpush1.msra.mxu0 0.0
    %1419 = vmatprep.subr.mxu0 0.0
    %1420 = vmatpush1.msra.mxu0 0.0
    %1421 = vmatprep.subr.mxu0 0.0
    %1422 = vmatpush1.msra.mxu0 0.0
    %1423 = vmatprep.subr.mxu0 0.0
    %1424 = vmatpush1.msra.mxu0 0.0
    %1425 = vmatprep.subr.mxu0 0.0
    %1426 = vmatpush1.msra.mxu0 0.0
    %1427 = vmatprep.subr.mxu0 0.0
    %1428 = vmatpush1.msra.mxu0 0.0
    %1429 = vmatprep.subr.mxu0 0.0
    %1430 = vmatpush1.msra.mxu0 0.0
    %1431 = vmatprep.subr.mxu0 0.0
    %1432 = vmatpush1.msra.mxu0 0.0
    %1433 = vmatprep.subr.mxu0 0.0
    %1434 = vmatpush1.msra.mxu0 0.0
    %1435 = vmatprep.subr.mxu0 0.0
    %1436 = vmatpush1.msra.mxu0 0.0
    %1437 = vmatprep.subr.mxu0 0.0
    %1438 = vmatpush1.msra.mxu0 0.0
    %1439 = vmatprep.subr.mxu0 0.0
    %1440 = vmatpush1.msra.mxu0 0.0
    %1441 = vmatprep.subr.mxu0 0.0
    %1442 = vmatpush1.msra.mxu0 0.0
    %1443 = vmatprep.subr.mxu0 0.0
    %1444 = vmatpush1.msra.mxu0 0.0
    %1445 = vmatprep.subr.mxu0 0.0
    %1446 = vmatpush1.msra.mxu0 0.0
    %1447 = vmatprep.subr.mxu0 0.0
    %1448 = vmatpush1.msra.mxu0 0.0
    %1449 = vmatprep.subr.mxu0 0.0
    %1450 = vmatpush1.msra.mxu0 0.0
    %1451 = vmatprep.subr.mxu0 0.0
    %1452 = vmatpush1.msra.mxu0 0.0
    %1453 = vmatprep.subr.mxu0 0.0
    %1454 = vmatpush1.msra.mxu0 0.0
    %1455 = vmatprep.subr.mxu0 0.0
    %1456 = vmatpush1.msra.mxu0 0.0
    %1457 = vmatprep.subr.mxu0 0.0
    %1458 = vmatpush1.msra.mxu0 0.0
    %1459 = vmatprep.subr.mxu0 0.0
    %1460 = vmatpush1.msra.mxu0 0.0
    %1461 = vmatprep.subr.mxu0 0.0
    %1462 = vmatpush1.msra.mxu0 0.0
    %1463 = vmatprep.mubr.f32.mxu0 0.0
    %1464 = vmatmul.mubr.f32.gmra.mrb[0].mxu0 %v834
    %v1465 = vpop.f32.mrb[0].mxu0
    %v1466 = vadd.f32 %v1288, %v1465
    %v1467 = vpop.f32.mrb[0].mxu0
    %1468 = vmatprep.mubr.f32.mxu0 0.0
    %1469 = vmatmul.mubr.f32.gmra.mrb[0].mxu0 %v837
    %v1470 = vpop.f32.mrb[0].mxu0
    %v1471 = vadd.f32 %v1293, %v1470
    %v1472 = vpop.f32.mrb[0].mxu0
    %1473 = vmatprep.mubr.f32.mxu0 0.0
    %1474 = vmatmul.mubr.f32.gmra.mrb[0].mxu0 %v840
    %v1475 = vpop.f32.mrb[0].mxu0
    %v1476 = vadd.f32 %v1298, %v1475
    %v1477 = vpop.f32.mrb[0].mxu0
    %1478 = vmatprep.mubr.f32.mxu0 0.0
    %1479 = vmatmul.mubr.f32.gmra.mrb[0].mxu0 %v843
    %v1480 = vpop.f32.mrb[0].mxu0
    %v1481 = vadd.f32 %v1303, %v1480
    %v1482 = vpop.f32.mrb[0].mxu0
    %1483 = vdwg.mxu0
    %1484 = vmatprep.subr.mxu0 0.0
    %1485 = vmatpush1.msra.mxu0 %v798
    %1486 = vmatprep.subr.mxu0 0.0
    %1487 = vmatpush1.msra.mxu0 %v803
    %1488 = vmatprep.subr.mxu0 0.0
    %1489 = vmatpush1.msra.mxu0 %v808
    %1490 = vmatprep.subr.mxu0 0.0
    %1491 = vmatpush1.msra.mxu0 %v813
    %1492 = vmatprep.subr.mxu0 0.0
    %1493 = vmatpush1.msra.mxu0 0.0
    %1494 = vmatprep.subr.mxu0 0.0
    %1495 = vmatpush1.msra.mxu0 0.0
    %1496 = vmatprep.subr.mxu0 0.0
    %1497 = vmatpush1.msra.mxu0 0.0
    %1498 = vmatprep.subr.mxu0 0.0
    %1499 = vmatpush1.msra.mxu0 0.0
    %1500 = vmatprep.subr.mxu0 0.0
    %1501 = vmatpush1.msra.mxu0 0.0
    %1502 = vmatprep.subr.mxu0 0.0
    %1503 = vmatpush1.msra.mxu0 0.0
    %1504 = vmatprep.subr.mxu0 0.0
    %1505 = vmatpush1.msra.mxu0 0.0
    %1506 = vmatprep.subr.mxu0 0.0
    %1507 = vmatpush1.msra.mxu0 0.0
    %1508 = vmatprep.subr.mxu0 0.0
    %1509 = vmatpush1.msra.mxu0 0.0
    %1510 = vmatprep.subr.mxu0 0.0
    %1511 = vmatpush1.msra.mxu0 0.0
    %1512 = vmatprep.subr.mxu0 0.0
    %1513 = vmatpush1.msra.mxu0 0.0
    %1514 = vmatprep.subr.mxu0 0.0
    %1515 = vmatpush1.msra.mxu0 0.0
    %1516 = vmatprep.subr.mxu0 0.0
    %1517 = vmatpush1.msra.mxu0 0.0
    %1518 = vmatprep.subr.mxu0 0.0
    %1519 = vmatpush1.msra.mxu0 0.0
    %1520 = vmatprep.subr.mxu0 0.0
    %1521 = vmatpush1.msra.mxu0 0.0
    %1522 = vmatprep.subr.mxu0 0.0
    %1523 = vmatpush1.msra.mxu0 0.0
    %1524 = vmatprep.subr.mxu0 0.0
    %1525 = vmatpush1.msra.mxu0 0.0
    %1526 = vmatprep.subr.mxu0 0.0
    %1527 = vmatpush1.msra.mxu0 0.0
    %1528 = vmatprep.subr.mxu0 0.0
    %1529 = vmatpush1.msra.mxu0 0.0
    %1530 = vmatprep.subr.mxu0 0.0
    %1531 = vmatpush1.msra.mxu0 0.0
    %1532 = vmatprep.subr.mxu0 0.0
    %1533 = vmatpush1.msra.mxu0 0.0
    %1534 = vmatprep.subr.mxu0 0.0
    %1535 = vmatpush1.msra.mxu0 0.0
    %1536 = vmatprep.subr.mxu0 0.0
    %1537 = vmatpush1.msra.mxu0 0.0
    %1538 = vmatprep.subr.mxu0 0.0
    %1539 = vmatpush1.msra.mxu0 0.0
    %1540 = vmatprep.subr.mxu0 0.0
    %1541 = vmatpush1.msra.mxu0 0.0
    %1542 = vmatprep.subr.mxu0 0.0
    %1543 = vmatpush1.msra.mxu0 0.0
    %1544 = vmatprep.subr.mxu0 0.0
    %1545 = vmatpush1.msra.mxu0 0.0
    %1546 = vmatprep.subr.mxu0 0.0
    %1547 = vmatpush1.msra.mxu0 0.0
    %1548 = vmatprep.mubr.f32.mxu0 0.0
    %1549 = vmatmul.mubr.f32.gmra.mrb[0].mxu0 %v931
    %v1550 = vpop.f32.mrb[0].mxu0
    %v1551 = vadd.f32 %v1373, %v1550
    %v1552 = vpop.f32.mrb[0].mxu0
    %1553 = vmatprep.mubr.f32.mxu0 0.0
    %1554 = vmatmul.mubr.f32.gmra.mrb[0].mxu0 %v934
    %v1555 = vpop.f32.mrb[0].mxu0
    %v1556 = vadd.f32 %v1378, %v1555
    %v1557 = vpop.f32.mrb[0].mxu0
    %1558 = vmatprep.mubr.f32.mxu0 0.0
    %1559 = vmatmul.mubr.f32.gmra.mrb[0].mxu0 %v937
    %v1560 = vpop.f32.mrb[0].mxu0
    %v1561 = vadd.f32 %v1383, %v1560
    %v1562 = vpop.f32.mrb[0].mxu0
    %1563 = vmatprep.mubr.f32.mxu0 0.0
    %1564 = vmatmul.mubr.f32.gmra.mrb[0].mxu0 %v940
    %v1565 = vpop.f32.mrb[0].mxu0
    %v1566 = vadd.f32 %v1388, %v1565
    %v1567 = vpop.f32.mrb[0].mxu0
    %1568 = vdwg.mxu0
    %v1569 = vld [vmem:[%s0] sm:$0xff]
    %v1570 = vld [vmem:[%s0 + $0x8] sm:$0xff]
    %v1571 = vld [vmem:[%s0 + $0x10] sm:$0xff]
    %v1572 = vld [vmem:[%s0 + $0x18] sm:$0xff]
    %v1573 = vld [vmem:[%s0 + $0x40] sm:$0xff]
    %v1574 = vld [vmem:[%s0 + $0x48] sm:$0xff]
    %v1575 = vld [vmem:[%s0 + $0x50] sm:$0xff]
    %v1576 = vld [vmem:[%s0 + $0x58] sm:$0xff]
    %s1577 = scalar_lea.vmem %s0, 32
    %v1578 = vld [vmem:[%s1577] sm:$0xff]
    %v1579 = vld [vmem:[%s1577 + $0x8] sm:$0xff]
    %v1580 = vld [vmem:[%s1577 + $0x10] sm:$0xff]
    %v1581 = vld [vmem:[%s1577 + $0x18] sm:$0xff]
    %v1582 = vld [vmem:[%s1577 + $0x40] sm:$0xff]
    %v1583 = vld [vmem:[%s1577 + $0x48] sm:$0xff]
    %v1584 = vld [vmem:[%s1577 + $0x50] sm:$0xff]
    %v1585 = vld [vmem:[%s1577 + $0x58] sm:$0xff]
    %v1587 = vsel %vm79, %v1569, 0
    %v1590 = vsel %vm79, %v1570, 0
    %v1593 = vsel %vm79, %v1571, 0
    %v1596 = vsel %vm79, %v1572, 0
    %1598 = vmatprep.subr.mxu0 0.0
    %1599 = vmatpush1.msra.mxu0 %v1391
    %1600 = vmatprep.subr.mxu0 0.0
    %1601 = vmatpush1.msra.mxu0 %v1392
    %1602 = vmatprep.subr.mxu0 0.0
    %1603 = vmatpush1.msra.mxu0 %v1393
    %1604 = vmatprep.subr.mxu0 0.0
    %1605 = vmatpush1.msra.mxu0 %v1394
    %1606 = vmatprep.subr.mxu0 0.0
    %1607 = vmatpush1.msra.mxu0 0.0
    %1608 = vmatprep.subr.mxu0 0.0
    %1609 = vmatpush1.msra.mxu0 0.0
    %1610 = vmatprep.subr.mxu0 0.0
    %1611 = vmatpush1.msra.mxu0 0.0
    %1612 = vmatprep.subr.mxu0 0.0
    %1613 = vmatpush1.msra.mxu0 0.0
    %1614 = vmatprep.subr.mxu0 0.0
    %1615 = vmatpush1.msra.mxu0 0.0
    %1616 = vmatprep.subr.mxu0 0.0
    %1617 = vmatpush1.msra.mxu0 0.0
    %1618 = vmatprep.subr.mxu0 0.0
    %1619 = vmatpush1.msra.mxu0 0.0
    %1620 = vmatprep.subr.mxu0 0.0
    %1621 = vmatpush1.msra.mxu0 0.0
    %1622 = vmatprep.subr.mxu0 0.0
    %1623 = vmatpush1.msra.mxu0 0.0
    %1624 = vmatprep.subr.mxu0 0.0
    %1625 = vmatpush1.msra.mxu0 0.0
    %1626 = vmatprep.subr.mxu0 0.0
    %1627 = vmatpush1.msra.mxu0 0.0
    %1628 = vmatprep.subr.mxu0 0.0
    %1629 = vmatpush1.msra.mxu0 0.0
    %1630 = vmatprep.subr.mxu0 0.0
    %1631 = vmatpush1.msra.mxu0 0.0
    %1632 = vmatprep.subr.mxu0 0.0
    %1633 = vmatpush1.msra.mxu0 0.0
    %1634 = vmatprep.subr.mxu0 0.0
    %1635 = vmatpush1.msra.mxu0 0.0
    %1636 = vmatprep.subr.mxu0 0.0
    %1637 = vmatpush1.msra.mxu0 0.0
    %1638 = vmatprep.subr.mxu0 0.0
    %1639 = vmatpush1.msra.mxu0 0.0
    %1640 = vmatprep.subr.mxu0 0.0
    %1641 = vmatpush1.msra.mxu0 0.0
    %1642 = vmatprep.subr.mxu0 0.0
    %1643 = vmatpush1.msra.mxu0 0.0
    %1644 = vmatprep.subr.mxu0 0.0
    %1645 = vmatpush1.msra.mxu0 0.0
    %1646 = vmatprep.subr.mxu0 0.0
    %1647 = vmatpush1.msra.mxu0 0.0
    %1648 = vmatprep.subr.mxu0 0.0
    %1649 = vmatpush1.msra.mxu0 0.0
    %1650 = vmatprep.subr.mxu0 0.0
    %1651 = vmatpush1.msra.mxu0 0.0
    %1652 = vmatprep.subr.mxu0 0.0
    %1653 = vmatpush1.msra.mxu0 0.0
    %1654 = vmatprep.subr.mxu0 0.0
    %1655 = vmatpush1.msra.mxu0 0.0
    %1656 = vmatprep.subr.mxu0 0.0
    %1657 = vmatpush1.msra.mxu0 0.0
    %1658 = vmatprep.subr.mxu0 0.0
    %1659 = vmatpush1.msra.mxu0 0.0
    %1660 = vmatprep.subr.mxu0 0.0
    %1661 = vmatpush1.msra.mxu0 0.0
    %1662 = vmatprep.mubr.f32.mxu0 0.0
    %1663 = vmatmul.mubr.f32.gmra.mrb[0].mxu0 %v1587
    %v1664 = vpop.f32.mrb[0].mxu0
    %v1665 = vadd.f32 0.0, %v1664
    %v1666 = vpop.f32.mrb[0].mxu0
    %1667 = vmatprep.mubr.f32.mxu0 0.0
    %1668 = vmatmul.mubr.f32.gmra.mrb[0].mxu0 %v1590
    %v1669 = vpop.f32.mrb[0].mxu0
    %v1670 = vadd.f32 0.0, %v1669
    %v1671 = vpop.f32.mrb[0].mxu0
    %1672 = vmatprep.mubr.f32.mxu0 0.0
    %1673 = vmatmul.mubr.f32.gmra.mrb[0].mxu0 %v1593
    %v1674 = vpop.f32.mrb[0].mxu0
    %v1675 = vadd.f32 0.0, %v1674
    %v1676 = vpop.f32.mrb[0].mxu0
    %1677 = vmatprep.mubr.f32.mxu0 0.0
    %1678 = vmatmul.mubr.f32.gmra.mrb[0].mxu0 %v1596
    %v1679 = vpop.f32.mrb[0].mxu0
    %v1680 = vadd.f32 0.0, %v1679
    %v1681 = vpop.f32.mrb[0].mxu0
    %1682 = vdwg.mxu0
    %v1684 = vsel %vm79, %v1573, 0
    %v1687 = vsel %vm79, %v1574, 0
    %v1690 = vsel %vm79, %v1575, 0
    %v1693 = vsel %vm79, %v1576, 0
    %1695 = vmatprep.subr.mxu0 0.0
    %1696 = vmatpush1.msra.mxu0 %v1395
    %1697 = vmatprep.subr.mxu0 0.0
    %1698 = vmatpush1.msra.mxu0 %v1396
    %1699 = vmatprep.subr.mxu0 0.0
    %1700 = vmatpush1.msra.mxu0 %v1397
    %1701 = vmatprep.subr.mxu0 0.0
    %1702 = vmatpush1.msra.mxu0 %v1398
    %1703 = vmatprep.subr.mxu0 0.0
    %1704 = vmatpush1.msra.mxu0 0.0
    %1705 = vmatprep.subr.mxu0 0.0
    %1706 = vmatpush1.msra.mxu0 0.0
    %1707 = vmatprep.subr.mxu0 0.0
    %1708 = vmatpush1.msra.mxu0 0.0
    %1709 = vmatprep.subr.mxu0 0.0
    %1710 = vmatpush1.msra.mxu0 0.0
    %1711 = vmatprep.subr.mxu0 0.0
    %1712 = vmatpush1.msra.mxu0 0.0
    %1713 = vmatprep.subr.mxu0 0.0
    %1714 = vmatpush1.msra.mxu0 0.0
    %1715 = vmatprep.subr.mxu0 0.0
    %1716 = vmatpush1.msra.mxu0 0.0
    %1717 = vmatprep.subr.mxu0 0.0
    %1718 = vmatpush1.msra.mxu0 0.0
    %1719 = vmatprep.subr.mxu0 0.0
    %1720 = vmatpush1.msra.mxu0 0.0
    %1721 = vmatprep.subr.mxu0 0.0
    %1722 = vmatpush1.msra.mxu0 0.0
    %1723 = vmatprep.subr.mxu0 0.0
    %1724 = vmatpush1.msra.mxu0 0.0
    %1725 = vmatprep.subr.mxu0 0.0
    %1726 = vmatpush1.msra.mxu0 0.0
    %1727 = vmatprep.subr.mxu0 0.0
    %1728 = vmatpush1.msra.mxu0 0.0
    %1729 = vmatprep.subr.mxu0 0.0
    %1730 = vmatpush1.msra.mxu0 0.0
    %1731 = vmatprep.subr.mxu0 0.0
    %1732 = vmatpush1.msra.mxu0 0.0
    %1733 = vmatprep.subr.mxu0 0.0
    %1734 = vmatpush1.msra.mxu0 0.0
    %1735 = vmatprep.subr.mxu0 0.0
    %1736 = vmatpush1.msra.mxu0 0.0
    %1737 = vmatprep.subr.mxu0 0.0
    %1738 = vmatpush1.msra.mxu0 0.0
    %1739 = vmatprep.subr.mxu0 0.0
    %1740 = vmatpush1.msra.mxu0 0.0
    %1741 = vmatprep.subr.mxu0 0.0
    %1742 = vmatpush1.msra.mxu0 0.0
    %1743 = vmatprep.subr.mxu0 0.0
    %1744 = vmatpush1.msra.mxu0 0.0
    %1745 = vmatprep.subr.mxu0 0.0
    %1746 = vmatpush1.msra.mxu0 0.0
    %1747 = vmatprep.subr.mxu0 0.0
    %1748 = vmatpush1.msra.mxu0 0.0
    %1749 = vmatprep.subr.mxu0 0.0
    %1750 = vmatpush1.msra.mxu0 0.0
    %1751 = vmatprep.subr.mxu0 0.0
    %1752 = vmatpush1.msra.mxu0 0.0
    %1753 = vmatprep.subr.mxu0 0.0
    %1754 = vmatpush1.msra.mxu0 0.0
    %1755 = vmatprep.subr.mxu0 0.0
    %1756 = vmatpush1.msra.mxu0 0.0
    %1757 = vmatprep.subr.mxu0 0.0
    %1758 = vmatpush1.msra.mxu0 0.0
    %1759 = vmatprep.mubr.f32.mxu0 0.0
    %1760 = vmatmul.mubr.f32.gmra.mrb[0].mxu0 %v1684
    %v1761 = vpop.f32.mrb[0].mxu0
    %v1762 = vadd.f32 0.0, %v1761
    %v1763 = vpop.f32.mrb[0].mxu0
    %1764 = vmatprep.mubr.f32.mxu0 0.0
    %1765 = vmatmul.mubr.f32.gmra.mrb[0].mxu0 %v1687
    %v1766 = vpop.f32.mrb[0].mxu0
    %v1767 = vadd.f32 0.0, %v1766
    %v1768 = vpop.f32.mrb[0].mxu0
    %1769 = vmatprep.mubr.f32.mxu0 0.0
    %1770 = vmatmul.mubr.f32.gmra.mrb[0].mxu0 %v1690
    %v1771 = vpop.f32.mrb[0].mxu0
    %v1772 = vadd.f32 0.0, %v1771
    %v1773 = vpop.f32.mrb[0].mxu0
    %1774 = vmatprep.mubr.f32.mxu0 0.0
    %1775 = vmatmul.mubr.f32.gmra.mrb[0].mxu0 %v1693
    %v1776 = vpop.f32.mrb[0].mxu0
    %v1777 = vadd.f32 0.0, %v1776
    %v1778 = vpop.f32.mrb[0].mxu0
    %1779 = vdwg.mxu0
    %v1781 = vsel %vm79, %v1578, 0
    %v1784 = vsel %vm79, %v1579, 0
    %v1787 = vsel %vm79, %v1580, 0
    %v1790 = vsel %vm79, %v1581, 0
    %1792 = vmatprep.subr.mxu0 0.0
    %1793 = vmatpush1.msra.mxu0 %v1466
    %1794 = vmatprep.subr.mxu0 0.0
    %1795 = vmatpush1.msra.mxu0 %v1471
    %1796 = vmatprep.subr.mxu0 0.0
    %1797 = vmatpush1.msra.mxu0 %v1476
    %1798 = vmatprep.subr.mxu0 0.0
    %1799 = vmatpush1.msra.mxu0 %v1481
    %1800 = vmatprep.subr.mxu0 0.0
    %1801 = vmatpush1.msra.mxu0 0.0
    %1802 = vmatprep.subr.mxu0 0.0
    %1803 = vmatpush1.msra.mxu0 0.0
    %1804 = vmatprep.subr.mxu0 0.0
    %1805 = vmatpush1.msra.mxu0 0.0
    %1806 = vmatprep.subr.mxu0 0.0
    %1807 = vmatpush1.msra.mxu0 0.0
    %1808 = vmatprep.subr.mxu0 0.0
    %1809 = vmatpush1.msra.mxu0 0.0
    %1810 = vmatprep.subr.mxu0 0.0
    %1811 = vmatpush1.msra.mxu0 0.0
    %1812 = vmatprep.subr.mxu0 0.0
    %1813 = vmatpush1.msra.mxu0 0.0
    %1814 = vmatprep.subr.mxu0 0.0
    %1815 = vmatpush1.msra.mxu0 0.0
    %1816 = vmatprep.subr.mxu0 0.0
    %1817 = vmatpush1.msra.mxu0 0.0
    %1818 = vmatprep.subr.mxu0 0.0
    %1819 = vmatpush1.msra.mxu0 0.0
    %1820 = vmatprep.subr.mxu0 0.0
    %1821 = vmatpush1.msra.mxu0 0.0
    %1822 = vmatprep.subr.mxu0 0.0
    %1823 = vmatpush1.msra.mxu0 0.0
    %1824 = vmatprep.subr.mxu0 0.0
    %1825 = vmatpush1.msra.mxu0 0.0
    %1826 = vmatprep.subr.mxu0 0.0
    %1827 = vmatpush1.msra.mxu0 0.0
    %1828 = vmatprep.subr.mxu0 0.0
    %1829 = vmatpush1.msra.mxu0 0.0
    %1830 = vmatprep.subr.mxu0 0.0
    %1831 = vmatpush1.msra.mxu0 0.0
    %1832 = vmatprep.subr.mxu0 0.0
    %1833 = vmatpush1.msra.mxu0 0.0
    %1834 = vmatprep.subr.mxu0 0.0
    %1835 = vmatpush1.msra.mxu0 0.0
    %1836 = vmatprep.subr.mxu0 0.0
    %1837 = vmatpush1.msra.mxu0 0.0
    %1838 = vmatprep.subr.mxu0 0.0
    %1839 = vmatpush1.msra.mxu0 0.0
    %1840 = vmatprep.subr.mxu0 0.0
    %1841 = vmatpush1.msra.mxu0 0.0
    %1842 = vmatprep.subr.mxu0 0.0
    %1843 = vmatpush1.msra.mxu0 0.0
    %1844 = vmatprep.subr.mxu0 0.0
    %1845 = vmatpush1.msra.mxu0 0.0
    %1846 = vmatprep.subr.mxu0 0.0
    %1847 = vmatpush1.msra.mxu0 0.0
    %1848 = vmatprep.subr.mxu0 0.0
    %1849 = vmatpush1.msra.mxu0 0.0
    %1850 = vmatprep.subr.mxu0 0.0
    %1851 = vmatpush1.msra.mxu0 0.0
    %1852 = vmatprep.subr.mxu0 0.0
    %1853 = vmatpush1.msra.mxu0 0.0
    %1854 = vmatprep.subr.mxu0 0.0
    %1855 = vmatpush1.msra.mxu0 0.0
    %1856 = vmatprep.mubr.f32.mxu0 0.0
    %1857 = vmatmul.mubr.f32.gmra.mrb[0].mxu0 %v1781
    %v1858 = vpop.f32.mrb[0].mxu0
    %v1859 = vadd.f32 0.0, %v1858
    %v1860 = vpop.f32.mrb[0].mxu0
    %1861 = vmatprep.mubr.f32.mxu0 0.0
    %1862 = vmatmul.mubr.f32.gmra.mrb[0].mxu0 %v1784
    %v1863 = vpop.f32.mrb[0].mxu0
    %v1864 = vadd.f32 0.0, %v1863
    %v1865 = vpop.f32.mrb[0].mxu0
    %1866 = vmatprep.mubr.f32.mxu0 0.0
    %1867 = vmatmul.mubr.f32.gmra.mrb[0].mxu0 %v1787
    %v1868 = vpop.f32.mrb[0].mxu0
    %v1869 = vadd.f32 0.0, %v1868
    %v1870 = vpop.f32.mrb[0].mxu0
    %1871 = vmatprep.mubr.f32.mxu0 0.0
    %1872 = vmatmul.mubr.f32.gmra.mrb[0].mxu0 %v1790
    %v1873 = vpop.f32.mrb[0].mxu0
    %v1874 = vadd.f32 0.0, %v1873
    %v1875 = vpop.f32.mrb[0].mxu0
    %1876 = vdwg.mxu0
    %v1878 = vsel %vm79, %v1582, 0
    %v1881 = vsel %vm79, %v1583, 0
    %v1884 = vsel %vm79, %v1584, 0
    %v1887 = vsel %vm79, %v1585, 0
    %1889 = vmatprep.subr.mxu0 0.0
    %1890 = vmatpush1.msra.mxu0 %v1551
    %1891 = vmatprep.subr.mxu0 0.0
    %1892 = vmatpush1.msra.mxu0 %v1556
    %1893 = vmatprep.subr.mxu0 0.0
    %1894 = vmatpush1.msra.mxu0 %v1561
    %1895 = vmatprep.subr.mxu0 0.0
    %1896 = vmatpush1.msra.mxu0 %v1566
    %1897 = vmatprep.subr.mxu0 0.0
    %1898 = vmatpush1.msra.mxu0 0.0
    %1899 = vmatprep.subr.mxu0 0.0
    %1900 = vmatpush1.msra.mxu0 0.0
    %1901 = vmatprep.subr.mxu0 0.0
    %1902 = vmatpush1.msra.mxu0 0.0
    %1903 = vmatprep.subr.mxu0 0.0
    %1904 = vmatpush1.msra.mxu0 0.0
    %1905 = vmatprep.subr.mxu0 0.0
    %1906 = vmatpush1.msra.mxu0 0.0
    %1907 = vmatprep.subr.mxu0 0.0
    %1908 = vmatpush1.msra.mxu0 0.0
    %1909 = vmatprep.subr.mxu0 0.0
    %1910 = vmatpush1.msra.mxu0 0.0
    %1911 = vmatprep.subr.mxu0 0.0
    %1912 = vmatpush1.msra.mxu0 0.0
    %1913 = vmatprep.subr.mxu0 0.0
    %1914 = vmatpush1.msra.mxu0 0.0
    %1915 = vmatprep.subr.mxu0 0.0
    %1916 = vmatpush1.msra.mxu0 0.0
    %1917 = vmatprep.subr.mxu0 0.0
    %1918 = vmatpush1.msra.mxu0 0.0
    %1919 = vmatprep.subr.mxu0 0.0
    %1920 = vmatpush1.msra.mxu0 0.0
    %1921 = vmatprep.subr.mxu0 0.0
    %1922 = vmatpush1.msra.mxu0 0.0
    %1923 = vmatprep.subr.mxu0 0.0
    %1924 = vmatpush1.msra.mxu0 0.0
    %1925 = vmatprep.subr.mxu0 0.0
    %1926 = vmatpush1.msra.mxu0 0.0
    %1927 = vmatprep.subr.mxu0 0.0
    %1928 = vmatpush1.msra.mxu0 0.0
    %1929 = vmatprep.subr.mxu0 0.0
    %1930 = vmatpush1.msra.mxu0 0.0
    %1931 = vmatprep.subr.mxu0 0.0
    %1932 = vmatpush1.msra.mxu0 0.0
    %1933 = vmatprep.subr.mxu0 0.0
    %1934 = vmatpush1.msra.mxu0 0.0
    %1935 = vmatprep.subr.mxu0 0.0
    %1936 = vmatpush1.msra.mxu0 0.0
    %1937 = vmatprep.subr.mxu0 0.0
    %1938 = vmatpush1.msra.mxu0 0.0
    %1939 = vmatprep.subr.mxu0 0.0
    %1940 = vmatpush1.msra.mxu0 0.0
    %1941 = vmatprep.subr.mxu0 0.0
    %1942 = vmatpush1.msra.mxu0 0.0
    %1943 = vmatprep.subr.mxu0 0.0
    %1944 = vmatpush1.msra.mxu0 0.0
    %1945 = vmatprep.subr.mxu0 0.0
    %1946 = vmatpush1.msra.mxu0 0.0
    %1947 = vmatprep.subr.mxu0 0.0
    %1948 = vmatpush1.msra.mxu0 0.0
    %1949 = vmatprep.subr.mxu0 0.0
    %1950 = vmatpush1.msra.mxu0 0.0
    %1951 = vmatprep.subr.mxu0 0.0
    %1952 = vmatpush1.msra.mxu0 0.0
    %1953 = vmatprep.mubr.f32.mxu0 0.0
    %1954 = vmatmul.mubr.f32.gmra.mrb[0].mxu0 %v1878
    %v1955 = vpop.f32.mrb[0].mxu0
    %v1956 = vadd.f32 0.0, %v1955
    %v1957 = vpop.f32.mrb[0].mxu0
    %1958 = vmatprep.mubr.f32.mxu0 0.0
    %1959 = vmatmul.mubr.f32.gmra.mrb[0].mxu0 %v1881
    %v1960 = vpop.f32.mrb[0].mxu0
    %v1961 = vadd.f32 0.0, %v1960
    %v1962 = vpop.f32.mrb[0].mxu0
    %1963 = vmatprep.mubr.f32.mxu0 0.0
    %1964 = vmatmul.mubr.f32.gmra.mrb[0].mxu0 %v1884
    %v1965 = vpop.f32.mrb[0].mxu0
    %v1966 = vadd.f32 0.0, %v1965
    %v1967 = vpop.f32.mrb[0].mxu0
    %1968 = vmatprep.mubr.f32.mxu0 0.0
    %1969 = vmatmul.mubr.f32.gmra.mrb[0].mxu0 %v1887
    %v1970 = vpop.f32.mrb[0].mxu0
    %v1971 = vadd.f32 0.0, %v1970
    %v1972 = vpop.f32.mrb[0].mxu0
    %1973 = vdwg.mxu0
    %1974 = vmatprep.subr.mxu0 0.0
    %1975 = vmatpush1.msra.mxu0 %v1391
    %1976 = vmatprep.subr.mxu0 0.0
    %1977 = vmatpush1.msra.mxu0 %v1392
    %1978 = vmatprep.subr.mxu0 0.0
    %1979 = vmatpush1.msra.mxu0 %v1393
    %1980 = vmatprep.subr.mxu0 0.0
    %1981 = vmatpush1.msra.mxu0 %v1394
    %1982 = vmatprep.subr.mxu0 0.0
    %1983 = vmatpush1.msra.mxu0 0.0
    %1984 = vmatprep.subr.mxu0 0.0
    %1985 = vmatpush1.msra.mxu0 0.0
    %1986 = vmatprep.subr.mxu0 0.0
    %1987 = vmatpush1.msra.mxu0 0.0
    %1988 = vmatprep.subr.mxu0 0.0
    %1989 = vmatpush1.msra.mxu0 0.0
    %1990 = vmatprep.subr.mxu0 0.0
    %1991 = vmatpush1.msra.mxu0 0.0
    %1992 = vmatprep.subr.mxu0 0.0
    %1993 = vmatpush1.msra.mxu0 0.0
    %1994 = vmatprep.subr.mxu0 0.0
    %1995 = vmatpush1.msra.mxu0 0.0
    %1996 = vmatprep.subr.mxu0 0.0
    %1997 = vmatpush1.msra.mxu0 0.0
    %1998 = vmatprep.subr.mxu0 0.0
    %1999 = vmatpush1.msra.mxu0 0.0
    %2000 = vmatprep.subr.mxu0 0.0
    %2001 = vmatpush1.msra.mxu0 0.0
    %2002 = vmatprep.subr.mxu0 0.0
    %2003 = vmatpush1.msra.mxu0 0.0
    %2004 = vmatprep.subr.mxu0 0.0
    %2005 = vmatpush1.msra.mxu0 0.0
    %2006 = vmatprep.subr.mxu0 0.0
    %2007 = vmatpush1.msra.mxu0 0.0
    %2008 = vmatprep.subr.mxu0 0.0
    %2009 = vmatpush1.msra.mxu0 0.0
    %2010 = vmatprep.subr.mxu0 0.0
    %2011 = vmatpush1.msra.mxu0 0.0
    %2012 = vmatprep.subr.mxu0 0.0
    %2013 = vmatpush1.msra.mxu0 0.0
    %2014 = vmatprep.subr.mxu0 0.0
    %2015 = vmatpush1.msra.mxu0 0.0
    %2016 = vmatprep.subr.mxu0 0.0
    %2017 = vmatpush1.msra.mxu0 0.0
    %2018 = vmatprep.subr.mxu0 0.0
    %2019 = vmatpush1.msra.mxu0 0.0
    %2020 = vmatprep.subr.mxu0 0.0
    %2021 = vmatpush1.msra.mxu0 0.0
    %2022 = vmatprep.subr.mxu0 0.0
    %2023 = vmatpush1.msra.mxu0 0.0
    %2024 = vmatprep.subr.mxu0 0.0
    %2025 = vmatpush1.msra.mxu0 0.0
    %2026 = vmatprep.subr.mxu0 0.0
    %2027 = vmatpush1.msra.mxu0 0.0
    %2028 = vmatprep.subr.mxu0 0.0
    %2029 = vmatpush1.msra.mxu0 0.0
    %2030 = vmatprep.subr.mxu0 0.0
    %2031 = vmatpush1.msra.mxu0 0.0
    %2032 = vmatprep.subr.mxu0 0.0
    %2033 = vmatpush1.msra.mxu0 0.0
    %2034 = vmatprep.subr.mxu0 0.0
    %2035 = vmatpush1.msra.mxu0 0.0
    %2036 = vmatprep.subr.mxu0 0.0
    %2037 = vmatpush1.msra.mxu0 0.0
    %2038 = vmatprep.mubr.f32.mxu0 0.0
    %2039 = vmatmul.mubr.f32.gmra.mrb[0].mxu0 %v1781
    %v2040 = vpop.f32.mrb[0].mxu0
    %v2041 = vadd.f32 0.0, %v2040
    %v2042 = vpop.f32.mrb[0].mxu0
    %2043 = vmatprep.mubr.f32.mxu0 0.0
    %2044 = vmatmul.mubr.f32.gmra.mrb[0].mxu0 %v1784
    %v2045 = vpop.f32.mrb[0].mxu0
    %v2046 = vadd.f32 0.0, %v2045
    %v2047 = vpop.f32.mrb[0].mxu0
    %2048 = vmatprep.mubr.f32.mxu0 0.0
    %2049 = vmatmul.mubr.f32.gmra.mrb[0].mxu0 %v1787
    %v2050 = vpop.f32.mrb[0].mxu0
    %v2051 = vadd.f32 0.0, %v2050
    %v2052 = vpop.f32.mrb[0].mxu0
    %2053 = vmatprep.mubr.f32.mxu0 0.0
    %2054 = vmatmul.mubr.f32.gmra.mrb[0].mxu0 %v1790
    %v2055 = vpop.f32.mrb[0].mxu0
    %v2056 = vadd.f32 0.0, %v2055
    %v2057 = vpop.f32.mrb[0].mxu0
    %2058 = vdwg.mxu0
    %2059 = vmatprep.subr.mxu0 0.0
    %2060 = vmatpush1.msra.mxu0 %v1395
    %2061 = vmatprep.subr.mxu0 0.0
    %2062 = vmatpush1.msra.mxu0 %v1396
    %2063 = vmatprep.subr.mxu0 0.0
    %2064 = vmatpush1.msra.mxu0 %v1397
    %2065 = vmatprep.subr.mxu0 0.0
    %2066 = vmatpush1.msra.mxu0 %v1398
    %2067 = vmatprep.subr.mxu0 0.0
    %2068 = vmatpush1.msra.mxu0 0.0
    %2069 = vmatprep.subr.mxu0 0.0
    %2070 = vmatpush1.msra.mxu0 0.0
    %2071 = vmatprep.subr.mxu0 0.0
    %2072 = vmatpush1.msra.mxu0 0.0
    %2073 = vmatprep.subr.mxu0 0.0
    %2074 = vmatpush1.msra.mxu0 0.0
    %2075 = vmatprep.subr.mxu0 0.0
    %2076 = vmatpush1.msra.mxu0 0.0
    %2077 = vmatprep.subr.mxu0 0.0
    %2078 = vmatpush1.msra.mxu0 0.0
    %2079 = vmatprep.subr.mxu0 0.0
    %2080 = vmatpush1.msra.mxu0 0.0
    %2081 = vmatprep.subr.mxu0 0.0
    %2082 = vmatpush1.msra.mxu0 0.0
    %2083 = vmatprep.subr.mxu0 0.0
    %2084 = vmatpush1.msra.mxu0 0.0
    %2085 = vmatprep.subr.mxu0 0.0
    %2086 = vmatpush1.msra.mxu0 0.0
    %2087 = vmatprep.subr.mxu0 0.0
    %2088 = vmatpush1.msra.mxu0 0.0
    %2089 = vmatprep.subr.mxu0 0.0
    %2090 = vmatpush1.msra.mxu0 0.0
    %2091 = vmatprep.subr.mxu0 0.0
    %2092 = vmatpush1.msra.mxu0 0.0
    %2093 = vmatprep.subr.mxu0 0.0
    %2094 = vmatpush1.msra.mxu0 0.0
    %2095 = vmatprep.subr.mxu0 0.0
    %2096 = vmatpush1.msra.mxu0 0.0
    %2097 = vmatprep.subr.mxu0 0.0
    %2098 = vmatpush1.msra.mxu0 0.0
    %2099 = vmatprep.subr.mxu0 0.0
    %2100 = vmatpush1.msra.mxu0 0.0
    %2101 = vmatprep.subr.mxu0 0.0
    %2102 = vmatpush1.msra.mxu0 0.0
    %2103 = vmatprep.subr.mxu0 0.0
    %2104 = vmatpush1.msra.mxu0 0.0
    %2105 = vmatprep.subr.mxu0 0.0
    %2106 = vmatpush1.msra.mxu0 0.0
    %2107 = vmatprep.subr.mxu0 0.0
    %2108 = vmatpush1.msra.mxu0 0.0
    %2109 = vmatprep.subr.mxu0 0.0
    %2110 = vmatpush1.msra.mxu0 0.0
    %2111 = vmatprep.subr.mxu0 0.0
    %2112 = vmatpush1.msra.mxu0 0.0
    %2113 = vmatprep.subr.mxu0 0.0
    %2114 = vmatpush1.msra.mxu0 0.0
    %2115 = vmatprep.subr.mxu0 0.0
    %2116 = vmatpush1.msra.mxu0 0.0
    %2117 = vmatprep.subr.mxu0 0.0
    %2118 = vmatpush1.msra.mxu0 0.0
    %2119 = vmatprep.subr.mxu0 0.0
    %2120 = vmatpush1.msra.mxu0 0.0
    %2121 = vmatprep.subr.mxu0 0.0
    %2122 = vmatpush1.msra.mxu0 0.0
    %2123 = vmatprep.mubr.f32.mxu0 0.0
    %2124 = vmatmul.mubr.f32.gmra.mrb[0].mxu0 %v1878
    %v2125 = vpop.f32.mrb[0].mxu0
    %v2126 = vadd.f32 0.0, %v2125
    %v2127 = vpop.f32.mrb[0].mxu0
    %2128 = vmatprep.mubr.f32.mxu0 0.0
    %2129 = vmatmul.mubr.f32.gmra.mrb[0].mxu0 %v1881
    %v2130 = vpop.f32.mrb[0].mxu0
    %v2131 = vadd.f32 0.0, %v2130
    %v2132 = vpop.f32.mrb[0].mxu0
    %2133 = vmatprep.mubr.f32.mxu0 0.0
    %2134 = vmatmul.mubr.f32.gmra.mrb[0].mxu0 %v1884
    %v2135 = vpop.f32.mrb[0].mxu0
    %v2136 = vadd.f32 0.0, %v2135
    %v2137 = vpop.f32.mrb[0].mxu0
    %2138 = vmatprep.mubr.f32.mxu0 0.0
    %2139 = vmatmul.mubr.f32.gmra.mrb[0].mxu0 %v1887
    %v2140 = vpop.f32.mrb[0].mxu0
    %v2141 = vadd.f32 0.0, %v2140
    %v2142 = vpop.f32.mrb[0].mxu0
    %2143 = vdwg.mxu0
    %v2144 = vsub.f32 %v1665, %v1859
    %v2145 = vsub.f32 %v1670, %v1864
    %v2146 = vsub.f32 %v1675, %v1869
    %v2147 = vsub.f32 %v1680, %v1874
    %v2148 = vsub.f32 %v1762, %v1956
    %v2149 = vsub.f32 %v1767, %v1961
    %v2150 = vsub.f32 %v1772, %v1966
    %v2151 = vsub.f32 %v1777, %v1971
    %2152 = vmatprep.subr.mxu0 0.0
    %2153 = vmatpush1.msra.mxu0 %v1466
    %2154 = vmatprep.subr.mxu0 0.0
    %2155 = vmatpush1.msra.mxu0 %v1471
    %2156 = vmatprep.subr.mxu0 0.0
    %2157 = vmatpush1.msra.mxu0 %v1476
    %2158 = vmatprep.subr.mxu0 0.0
    %2159 = vmatpush1.msra.mxu0 %v1481
    %2160 = vmatprep.subr.mxu0 0.0
    %2161 = vmatpush1.msra.mxu0 0.0
    %2162 = vmatprep.subr.mxu0 0.0
    %2163 = vmatpush1.msra.mxu0 0.0
    %2164 = vmatprep.subr.mxu0 0.0
    %2165 = vmatpush1.msra.mxu0 0.0
    %2166 = vmatprep.subr.mxu0 0.0
    %2167 = vmatpush1.msra.mxu0 0.0
    %2168 = vmatprep.subr.mxu0 0.0
    %2169 = vmatpush1.msra.mxu0 0.0
    %2170 = vmatprep.subr.mxu0 0.0
    %2171 = vmatpush1.msra.mxu0 0.0
    %2172 = vmatprep.subr.mxu0 0.0
    %2173 = vmatpush1.msra.mxu0 0.0
    %2174 = vmatprep.subr.mxu0 0.0
    %2175 = vmatpush1.msra.mxu0 0.0
    %2176 = vmatprep.subr.mxu0 0.0
    %2177 = vmatpush1.msra.mxu0 0.0
    %2178 = vmatprep.subr.mxu0 0.0
    %2179 = vmatpush1.msra.mxu0 0.0
    %2180 = vmatprep.subr.mxu0 0.0
    %2181 = vmatpush1.msra.mxu0 0.0
    %2182 = vmatprep.subr.mxu0 0.0
    %2183 = vmatpush1.msra.mxu0 0.0
    %2184 = vmatprep.subr.mxu0 0.0
    %2185 = vmatpush1.msra.mxu0 0.0
    %2186 = vmatprep.subr.mxu0 0.0
    %2187 = vmatpush1.msra.mxu0 0.0
    %2188 = vmatprep.subr.mxu0 0.0
    %2189 = vmatpush1.msra.mxu0 0.0
    %2190 = vmatprep.subr.mxu0 0.0
    %2191 = vmatpush1.msra.mxu0 0.0
    %2192 = vmatprep.subr.mxu0 0.0
    %2193 = vmatpush1.msra.mxu0 0.0
    %2194 = vmatprep.subr.mxu0 0.0
    %2195 = vmatpush1.msra.mxu0 0.0
    %2196 = vmatprep.subr.mxu0 0.0
    %2197 = vmatpush1.msra.mxu0 0.0
    %2198 = vmatprep.subr.mxu0 0.0
    %2199 = vmatpush1.msra.mxu0 0.0
    %2200 = vmatprep.subr.mxu0 0.0
    %2201 = vmatpush1.msra.mxu0 0.0
    %2202 = vmatprep.subr.mxu0 0.0
    %2203 = vmatpush1.msra.mxu0 0.0
    %2204 = vmatprep.subr.mxu0 0.0
    %2205 = vmatpush1.msra.mxu0 0.0
    %2206 = vmatprep.subr.mxu0 0.0
    %2207 = vmatpush1.msra.mxu0 0.0
    %2208 = vmatprep.subr.mxu0 0.0
    %2209 = vmatpush1.msra.mxu0 0.0
    %2210 = vmatprep.subr.mxu0 0.0
    %2211 = vmatpush1.msra.mxu0 0.0
    %2212 = vmatprep.subr.mxu0 0.0
    %2213 = vmatpush1.msra.mxu0 0.0
    %2214 = vmatprep.subr.mxu0 0.0
    %2215 = vmatpush1.msra.mxu0 0.0
    %2216 = vmatprep.mubr.f32.mxu0 0.0
    %2217 = vmatmul.mubr.f32.gmra.mrb[0].mxu0 %v1587
    %v2218 = vpop.f32.mrb[0].mxu0
    %v2219 = vadd.f32 %v2041, %v2218
    %v2220 = vpop.f32.mrb[0].mxu0
    %2221 = vmatprep.mubr.f32.mxu0 0.0
    %2222 = vmatmul.mubr.f32.gmra.mrb[0].mxu0 %v1590
    %v2223 = vpop.f32.mrb[0].mxu0
    %v2224 = vadd.f32 %v2046, %v2223
    %v2225 = vpop.f32.mrb[0].mxu0
    %2226 = vmatprep.mubr.f32.mxu0 0.0
    %2227 = vmatmul.mubr.f32.gmra.mrb[0].mxu0 %v1593
    %v2228 = vpop.f32.mrb[0].mxu0
    %v2229 = vadd.f32 %v2051, %v2228
    %v2230 = vpop.f32.mrb[0].mxu0
    %2231 = vmatprep.mubr.f32.mxu0 0.0
    %2232 = vmatmul.mubr.f32.gmra.mrb[0].mxu0 %v1596
    %v2233 = vpop.f32.mrb[0].mxu0
    %v2234 = vadd.f32 %v2056, %v2233
    %v2235 = vpop.f32.mrb[0].mxu0
    %2236 = vdwg.mxu0
    %2237 = vmatprep.subr.mxu0 0.0
    %2238 = vmatpush1.msra.mxu0 %v1551
    %2239 = vmatprep.subr.mxu0 0.0
    %2240 = vmatpush1.msra.mxu0 %v1556
    %2241 = vmatprep.subr.mxu0 0.0
    %2242 = vmatpush1.msra.mxu0 %v1561
    %2243 = vmatprep.subr.mxu0 0.0
    %2244 = vmatpush1.msra.mxu0 %v1566
    %2245 = vmatprep.subr.mxu0 0.0
    %2246 = vmatpush1.msra.mxu0 0.0
    %2247 = vmatprep.subr.mxu0 0.0
    %2248 = vmatpush1.msra.mxu0 0.0
    %2249 = vmatprep.subr.mxu0 0.0
    %2250 = vmatpush1.msra.mxu0 0.0
    %2251 = vmatprep.subr.mxu0 0.0
    %2252 = vmatpush1.msra.mxu0 0.0
    %2253 = vmatprep.subr.mxu0 0.0
    %2254 = vmatpush1.msra.mxu0 0.0
    %2255 = vmatprep.subr.mxu0 0.0
    %2256 = vmatpush1.msra.mxu0 0.0
    %2257 = vmatprep.subr.mxu0 0.0
    %2258 = vmatpush1.msra.mxu0 0.0
    %2259 = vmatprep.subr.mxu0 0.0
    %2260 = vmatpush1.msra.mxu0 0.0
    %2261 = vmatprep.subr.mxu0 0.0
    %2262 = vmatpush1.msra.mxu0 0.0
    %2263 = vmatprep.subr.mxu0 0.0
    %2264 = vmatpush1.msra.mxu0 0.0
    %2265 = vmatprep.subr.mxu0 0.0
    %2266 = vmatpush1.msra.mxu0 0.0
    %2267 = vmatprep.subr.mxu0 0.0
    %2268 = vmatpush1.msra.mxu0 0.0
    %2269 = vmatprep.subr.mxu0 0.0
    %2270 = vmatpush1.msra.mxu0 0.0
    %2271 = vmatprep.subr.mxu0 0.0
    %2272 = vmatpush1.msra.mxu0 0.0
    %2273 = vmatprep.subr.mxu0 0.0
    %2274 = vmatpush1.msra.mxu0 0.0
    %2275 = vmatprep.subr.mxu0 0.0
    %2276 = vmatpush1.msra.mxu0 0.0
    %2277 = vmatprep.subr.mxu0 0.0
    %2278 = vmatpush1.msra.mxu0 0.0
    %2279 = vmatprep.subr.mxu0 0.0
    %2280 = vmatpush1.msra.mxu0 0.0
    %2281 = vmatprep.subr.mxu0 0.0
    %2282 = vmatpush1.msra.mxu0 0.0
    %2283 = vmatprep.subr.mxu0 0.0
    %2284 = vmatpush1.msra.mxu0 0.0
    %2285 = vmatprep.subr.mxu0 0.0
    %2286 = vmatpush1.msra.mxu0 0.0
    %2287 = vmatprep.subr.mxu0 0.0
    %2288 = vmatpush1.msra.mxu0 0.0
    %2289 = vmatprep.subr.mxu0 0.0
    %2290 = vmatpush1.msra.mxu0 0.0
    %2291 = vmatprep.subr.mxu0 0.0
    %2292 = vmatpush1.msra.mxu0 0.0
    %2293 = vmatprep.subr.mxu0 0.0
    %2294 = vmatpush1.msra.mxu0 0.0
    %2295 = vmatprep.subr.mxu0 0.0
    %2296 = vmatpush1.msra.mxu0 0.0
    %2297 = vmatprep.subr.mxu0 0.0
    %2298 = vmatpush1.msra.mxu0 0.0
    %2299 = vmatprep.subr.mxu0 0.0
    %2300 = vmatpush1.msra.mxu0 0.0
    %2301 = vmatprep.mubr.f32.mxu0 0.0
    %2302 = vmatmul.mubr.f32.gmra.mrb[0].mxu0 %v1684
    %v2303 = vpop.f32.mrb[0].mxu0
    %v2304 = vadd.f32 %v2126, %v2303
    %v2305 = vpop.f32.mrb[0].mxu0
    %2306 = vmatprep.mubr.f32.mxu0 0.0
    %2307 = vmatmul.mubr.f32.gmra.mrb[0].mxu0 %v1687
    %v2308 = vpop.f32.mrb[0].mxu0
    %v2309 = vadd.f32 %v2131, %v2308
    %v2310 = vpop.f32.mrb[0].mxu0
    %2311 = vmatprep.mubr.f32.mxu0 0.0
    %2312 = vmatmul.mubr.f32.gmra.mrb[0].mxu0 %v1690
    %v2313 = vpop.f32.mrb[0].mxu0
    %v2314 = vadd.f32 %v2136, %v2313
    %v2315 = vpop.f32.mrb[0].mxu0
    %2316 = vmatprep.mubr.f32.mxu0 0.0
    %2317 = vmatmul.mubr.f32.gmra.mrb[0].mxu0 %v1693
    %v2318 = vpop.f32.mrb[0].mxu0
    %v2319 = vadd.f32 %v2141, %v2318
    %v2320 = vpop.f32.mrb[0].mxu0
    %2321 = vdwg.mxu0
    %vm2322 = vcmask 130048
    %2323 = vst.msk [vmem:[%s4] sm:$0xff] %vm2322, %v2144
    %2324 = vst.msk [vmem:[%s4 + $0x8] sm:$0xff] %vm2322, %v2145
    %2325 = vst.msk [vmem:[%s4 + $0x10] sm:$0xff] %vm2322, %v2146
    %2326 = vst.msk [vmem:[%s4 + $0x18] sm:$0xff] %vm2322, %v2147
    %2327 = vst.msk [vmem:[%s4 + $0x40] sm:$0xff] %vm2322, %v2148
    %2328 = vst.msk [vmem:[%s4 + $0x48] sm:$0xff] %vm2322, %v2149
    %2329 = vst.msk [vmem:[%s4 + $0x50] sm:$0xff] %vm2322, %v2150
    %2330 = vst.msk [vmem:[%s4 + $0x58] sm:$0xff] %vm2322, %v2151
    %s2331 = scalar_lea.vmem %s4, 32
    %2332 = vst.msk [vmem:[%s2331] sm:$0xff] %vm2322, %v2219
    %2333 = vst.msk [vmem:[%s2331 + $0x8] sm:$0xff] %vm2322, %v2224
    %2334 = vst.msk [vmem:[%s2331 + $0x10] sm:$0xff] %vm2322, %v2229
    %2335 = vst.msk [vmem:[%s2331 + $0x18] sm:$0xff] %vm2322, %v2234
    %2336 = vst.msk [vmem:[%s2331 + $0x40] sm:$0xff] %vm2322, %v2304
    %2337 = vst.msk [vmem:[%s2331 + $0x48] sm:$0xff] %vm2322, %v2309
    %2338 = vst.msk [vmem:[%s2331 + $0x50] sm:$0xff] %vm2322, %v2314
    %2339 = vst.msk [vmem:[%s2331 + $0x58] sm:$0xff] %vm2322, %v2319
    // Predicated region
    $region26: #{tpu_custom_call.1} parent=1 // pred_check
      _
    $region27: #{tpu_custom_call.1} parent=1 // pred_check_branch
      %2341 = sbr.rel (0) target = $region29
    $region28: #{tpu_custom_call.1} parent=1 // pred_region
      _
    $region29: #{tpu_custom_call.1} parent=1 // pred_fallthru
      _
    // Predicated region
    $region30: #{tpu_custom_call.1} parent=1 // pred_check
      _
    $region31: #{tpu_custom_call.1} parent=1 // pred_check_branch
      %2343 = sbr.rel (0) target = $region33
    $region32: #{tpu_custom_call.1} parent=1 // pred_region
      _
    $region33: #{tpu_custom_call.1} parent=1 // pred_fallthru
      _
    %2344 = vsyncpa [#allocation3], 1
    %2345 = vsyncpa [#allocation5], 1

</llo_original>
